<compile_context>
chip_gen: v6e
topology: v6e:2x2x1
jax: 0.10.0
libtpu: 0.0.40
codegen_flags: <defaults>
</compile_context>

<pallas_src>
import functools

import jax
import jax.numpy as jnp
from jax.experimental import pallas as pl
from jax.experimental.pallas import tpu as pltpu

C_IN = 8
F_OUT = 50
KSIZES = (3, 4, 5)
K_MAX = max(KSIZES)            # 5
PAD_T = K_MAX - min(KSIZES)    # 2 zero timesteps appended so Lout = L - 2 for all convs
F_PAD = 256                    # 3*F_OUT = 150 padded up to a multiple of 128 (lane-dense)


def cnn_kernel(x_ref, w_ref, b_ref, out_ref):
    # x_ref:   (TB, Lpad, C_IN)   f32
    # w_ref:   (K_MAX, C_IN, F_PAD) bf16   packed/combined conv weights
    # b_ref:   (1, F_PAD)         f32      packed/combined bias
    # out_ref: (TB, F_PAD)        f32
    TB, Lpad, C = x_ref.shape
    Lout = Lpad - K_MAX + 1          # == L - 2
    M = TB * Lout

    x = x_ref[...]                   # (TB, Lpad, C) f32

    # K_MAX shifted taps, each a bf16 (M, 8) @ (8, 256) MXU matmul, f32 accumulation.
    # First tap initializes the accumulator (no zeros + add).
    acc = None
    for k in range(K_MAX):
        xs = x[:, k:k + Lout, :].reshape(M, C).astype(jnp.bfloat16)
        d = jnp.dot(xs, w_ref[k], preferred_element_type=jnp.float32)   # (M, F_PAD) f32
        acc = d if acc is None else acc + d

    # Bias + ReLU in f32.
    y = jnp.maximum(acc + b_ref[...], 0.0)            # (M, F_PAD)
    y = y.reshape(TB, Lout, F_PAD)

    # Mask the padded tail positions: conv4 has 1 fewer valid position than Lout,
    # conv5 has 2 fewer.  Post-ReLU values are >= 0, so writing 0 there is exact.
    t_idx = jax.lax.broadcasted_iota(jnp.int32, (Lout, F_PAD), 0)
    f_idx = jax.lax.broadcasted_iota(jnp.int32, (Lout, F_PAD), 1)
    extra = jnp.where(f_idx < F_OUT, 0, jnp.where(f_idx < 2 * F_OUT, 1, 2))
    valid = t_idx < (Lout - extra)                     # (Lout, F_PAD) bool
    y = jnp.where(valid[None, :, :], y, 0.0)

    # Max over time: sublane/XLU reduction, F_PAD stays on lanes. Lane-dense store.
    out_ref[...] = jnp.max(y, axis=1)                  # (TB, F_PAD)


@functools.partial(jax.jit, static_argnames=("tb",))
def cnn_forward(x, w_comb, b_comb, *, tb=8):
    """x: (B, L, 8) f32; w_comb: (K_MAX, C_IN, F_PAD) bf16; b_comb: (1, F_PAD) f32."""
    B, L, C = x.shape
    assert C == C_IN and L >= K_MAX

    Lpad = L + PAD_T
    Bp = ((B + tb - 1) // tb) * tb
    # Zero-pad time (shared-Lout trick) and batch (grid divisibility); both stripped/masked.
    xp = jnp.zeros((Bp, Lpad, C), x.dtype).at[:B, :L, :].set(x)

    out = pl.pallas_call(
        cnn_kernel,
        out_shape=jax.ShapeDtypeStruct((Bp, F_PAD), jnp.float32),
        grid_spec=pltpu.PrefetchScalarGridSpec(
            num_scalar_prefetch=0,
            grid=(Bp // tb,),
            in_specs=[
                pl.BlockSpec((tb, Lpad, C_IN), lambda i: (i, 0, 0)),      # batch-tiled x
                pl.BlockSpec((K_MAX, C_IN, F_PAD), lambda i: (0, 0, 0)),  # resident weights
                pl.BlockSpec((1, F_PAD), lambda i: (0, 0)),               # resident bias
            ],
            out_specs=pl.BlockSpec((tb, F_PAD), lambda i: (i, 0)),
        ),
        compiler_params=pltpu.CompilerParams(
            dimension_semantics=("parallel",),
            vmem_limit_bytes=32 * 1024 * 1024,
        ),
    )(xp, w_comb, b_comb)

    return out[:B, : 3 * F_OUT]


def init_params(key):
    """PyTorch-layout params, Conv1d default init (uniform +-1/sqrt(C_in*K))."""
    params = []
    for i, K in enumerate(KSIZES):
        kw, kb = jax.random.split(jax.random.fold_in(key, i))
        bound = 1.0 / ((C_IN * K) ** 0.5)
        w_pt = jax.random.uniform(kw, (F_OUT, C_IN, K), jnp.float32, -bound, bound)
        b_pt = jax.random.uniform(kb, (F_OUT,), jnp.float32, -bound, bound)
        params.append((w_pt, b_pt))
    return params


def pack_params(params):
    """Pack the three convs into one (K_MAX, C_IN, F_PAD) bf16 weight + (1, F_PAD) f32 bias."""
    W = jnp.zeros((K_MAX, C_IN, F_PAD), jnp.float32)
    Bv = jnp.zeros((1, F_PAD), jnp.float32)
    for i, ((w_pt, b_pt), K) in enumerate(zip(params, KSIZES)):
        wk = jnp.transpose(w_pt, (2, 1, 0))                      # (K, C_IN, F_OUT)
        W = W.at[:K, :, i * F_OUT:(i + 1) * F_OUT].set(wk)
        Bv = Bv.at[0, i * F_OUT:(i + 1) * F_OUT].set(b_pt)
    return W.astype(jnp.bfloat16), Bv


def reference_forward(x, params):
    """Pure-JAX f32 reference of the PyTorch forward (for correctness check)."""
    B, L, _ = x.shape
    outs = []
    for (w_pt, b_pt), K in zip(params, KSIZES):
        Lout = L - K + 1
        acc = jnp.zeros((B, Lout, F_OUT), jnp.float32)
        for k in range(K):
            acc = acc + jnp.einsum('blc,fc->blf', x[:, k:k + Lout, :], w_pt[:, :, k])
        acc = jnp.maximum(acc + b_pt[None, None, :], 0.0)
        outs.append(jnp.max(acc, axis=1))
    return jnp.concatenate(outs, axis=1)


if __name__ == "__main__":
    key = jax.random.PRNGKey(0)
    kx, kp = jax.random.split(key)

    B, L = 16, 16                                  # module input: (B, seq_len, 8)
    x = jax.random.normal(kx, (B, L, C_IN), jnp.float32)
    params = init_params(kp)
    w_comb, b_comb = pack_params(params)

    out = cnn_forward(x, w_comb, b_comb, tb=8)
    out = jax.block_until_ready(out)

    ref = reference_forward(x, params)
    assert out.shape == (B, 3 * F_OUT), out.shape
    # bf16 matmul operands / f32 accumulation vs pure-f32 reference.
    assert jnp.allclose(out, ref, atol=5e-2, rtol=5e-2), \
        f"mismatch vs reference, max err {jnp.max(jnp.abs(out - ref))}"

    # NOTE: self.pool (MaxPool1d) and self.drop (Dropout) are defined in __init__
    # but never used in forward(), so they are intentionally not implemented.
    print("KERNEL_OK")
</pallas_src>

<mosaic_0001>
module attributes {stable_mosaic.version = 11 : i64} {
  func.func @cnn_kernel(%arg0: i32, %arg1: memref<8x18x8xf32, #tpu.memory_space<vmem>>, %arg2: memref<5x8x256xbf16, #tpu.memory_space<vmem>>, %arg3: memref<1x256xf32, #tpu.memory_space<vmem>>, %arg4: memref<8x256xf32, #tpu.memory_space<vmem>>) attributes {dimension_semantics = [#tpu.dimension_semantics<parallel>], iteration_bounds = array<i64: 2>, scalar_prefetch = 0 : i64, scratch_operands = 0 : i64, tpu.core_type = #tpu.core_type<tc>, window_params = [{transform_indices = @transform_0, window_bounds = array<i64: 8, 18, 8>}, {pipeline_mode = #tpu.pipeline_mode<synchronous>, transform_indices = @transform_1, window_bounds = array<i64: 5, 8, 256>}, {pipeline_mode = #tpu.pipeline_mode<synchronous>, transform_indices = @transform_2, window_bounds = array<i64: 1, 256>}, {transform_indices = @transform_3, window_bounds = array<i64: 8, 256>}]} {
    %c0 = arith.constant 0 : index
    %c0_0 = arith.constant 0 : index
    %c0_1 = arith.constant 0 : index
    %0 = vector.load %arg1[%c0, %c0_0, %c0_1] : memref<8x18x8xf32, #tpu.memory_space<vmem>>, vector<8x18x8xf32>
    %1 = vector.extract_strided_slice %0 {offsets = [0, 0, 0], sizes = [8, 14, 8], strides = [1, 1, 1]} : vector<8x18x8xf32> to vector<8x14x8xf32>
    %2 = vector.shape_cast %1 : vector<8x14x8xf32> to vector<112x8xf32>
    %3 = arith.truncf %2 : vector<112x8xf32> to vector<112x8xbf16>
    %c0_2 = arith.constant 0 : index
    %c0_3 = arith.constant 0 : index
    %c0_4 = arith.constant 0 : index
    %4 = vector.load %arg2[%c0_2, %c0_3, %c0_4] : memref<5x8x256xbf16, #tpu.memory_space<vmem>>, vector<1x8x256xbf16>
    %5 = vector.shape_cast %4 : vector<1x8x256xbf16> to vector<8x256xbf16>
    %cst = arith.constant dense<0.000000e+00> : vector<112x256xf32>
    %6 = tpu.matmul %3, %5, %cst {dimension_numbers = #tpu.dot_dimension_numbers<[1], [0], [0], [1], [0, 0, 1, 1], [], []>} : vector<112x8xbf16>, vector<8x256xbf16>, vector<112x256xf32> -> vector<112x256xf32>
    %7 = vector.extract_strided_slice %0 {offsets = [0, 1, 0], sizes = [8, 14, 8], strides = [1, 1, 1]} : vector<8x18x8xf32> to vector<8x14x8xf32>
    %8 = vector.shape_cast %7 : vector<8x14x8xf32> to vector<112x8xf32>
    %9 = arith.truncf %8 : vector<112x8xf32> to vector<112x8xbf16>
    %c1 = arith.constant 1 : index
    %c0_5 = arith.constant 0 : index
    %c0_6 = arith.constant 0 : index
    %10 = vector.load %arg2[%c1, %c0_5, %c0_6] : memref<5x8x256xbf16, #tpu.memory_space<vmem>>, vector<1x8x256xbf16>
    %11 = vector.shape_cast %10 : vector<1x8x256xbf16> to vector<8x256xbf16>
    %cst_7 = arith.constant dense<0.000000e+00> : vector<112x256xf32>
    %12 = tpu.matmul %9, %11, %cst_7 {dimension_numbers = #tpu.dot_dimension_numbers<[1], [0], [0], [1], [0, 0, 1, 1], [], []>} : vector<112x8xbf16>, vector<8x256xbf16>, vector<112x256xf32> -> vector<112x256xf32>
    %13 = arith.addf %6, %12 : vector<112x256xf32>
    %14 = vector.extract_strided_slice %0 {offsets = [0, 2, 0], sizes = [8, 14, 8], strides = [1, 1, 1]} : vector<8x18x8xf32> to vector<8x14x8xf32>
    %15 = vector.shape_cast %14 : vector<8x14x8xf32> to vector<112x8xf32>
    %16 = arith.truncf %15 : vector<112x8xf32> to vector<112x8xbf16>
    %c2 = arith.constant 2 : index
    %c0_8 = arith.constant 0 : index
    %c0_9 = arith.constant 0 : index
    %17 = vector.load %arg2[%c2, %c0_8, %c0_9] : memref<5x8x256xbf16, #tpu.memory_space<vmem>>, vector<1x8x256xbf16>
    %18 = vector.shape_cast %17 : vector<1x8x256xbf16> to vector<8x256xbf16>
    %cst_10 = arith.constant dense<0.000000e+00> : vector<112x256xf32>
    %19 = tpu.matmul %16, %18, %cst_10 {dimension_numbers = #tpu.dot_dimension_numbers<[1], [0], [0], [1], [0, 0, 1, 1], [], []>} : vector<112x8xbf16>, vector<8x256xbf16>, vector<112x256xf32> -> vector<112x256xf32>
    %20 = arith.addf %13, %19 : vector<112x256xf32>
    %21 = vector.extract_strided_slice %0 {offsets = [0, 3, 0], sizes = [8, 14, 8], strides = [1, 1, 1]} : vector<8x18x8xf32> to vector<8x14x8xf32>
    %22 = vector.shape_cast %21 : vector<8x14x8xf32> to vector<112x8xf32>
    %23 = arith.truncf %22 : vector<112x8xf32> to vector<112x8xbf16>
    %c3 = arith.constant 3 : index
    %c0_11 = arith.constant 0 : index
    %c0_12 = arith.constant 0 : index
    %24 = vector.load %arg2[%c3, %c0_11, %c0_12] : memref<5x8x256xbf16, #tpu.memory_space<vmem>>, vector<1x8x256xbf16>
    %25 = vector.shape_cast %24 : vector<1x8x256xbf16> to vector<8x256xbf16>
    %cst_13 = arith.constant dense<0.000000e+00> : vector<112x256xf32>
    %26 = tpu.matmul %23, %25, %cst_13 {dimension_numbers = #tpu.dot_dimension_numbers<[1], [0], [0], [1], [0, 0, 1, 1], [], []>} : vector<112x8xbf16>, vector<8x256xbf16>, vector<112x256xf32> -> vector<112x256xf32>
    %27 = arith.addf %20, %26 : vector<112x256xf32>
    %28 = vector.extract_strided_slice %0 {offsets = [0, 4, 0], sizes = [8, 14, 8], strides = [1, 1, 1]} : vector<8x18x8xf32> to vector<8x14x8xf32>
    %29 = vector.shape_cast %28 : vector<8x14x8xf32> to vector<112x8xf32>
    %30 = arith.truncf %29 : vector<112x8xf32> to vector<112x8xbf16>
    %c4 = arith.constant 4 : index
    %c0_14 = arith.constant 0 : index
    %c0_15 = arith.constant 0 : index
    %31 = vector.load %arg2[%c4, %c0_14, %c0_15] : memref<5x8x256xbf16, #tpu.memory_space<vmem>>, vector<1x8x256xbf16>
    %32 = vector.shape_cast %31 : vector<1x8x256xbf16> to vector<8x256xbf16>
    %cst_16 = arith.constant dense<0.000000e+00> : vector<112x256xf32>
    %33 = tpu.matmul %30, %32, %cst_16 {dimension_numbers = #tpu.dot_dimension_numbers<[1], [0], [0], [1], [0, 0, 1, 1], [], []>} : vector<112x8xbf16>, vector<8x256xbf16>, vector<112x256xf32> -> vector<112x256xf32>
    %34 = arith.addf %27, %33 : vector<112x256xf32>
    %c0_17 = arith.constant 0 : index
    %c0_18 = arith.constant 0 : index
    %35 = vector.load %arg3[%c0_17, %c0_18] : memref<1x256xf32, #tpu.memory_space<vmem>>, vector<1x256xf32>
    %36 = vector.broadcast %35 : vector<1x256xf32> to vector<112x256xf32>
    %37 = arith.addf %34, %36 : vector<112x256xf32>
    %cst_19 = arith.constant 0.000000e+00 : f32
    %38 = vector.broadcast %cst_19 : f32 to vector<112x256xf32>
    %39 = arith.maximumf %37, %38 : vector<112x256xf32>
    %40 = vector.shape_cast %39 : vector<112x256xf32> to vector<8x14x256xf32>
    %41 = tpu.iota {dimensions = array<i32: 0>} : vector<14x256xi32>
    %42 = tpu.iota {dimensions = array<i32: 1>} : vector<14x256xi32>
    %c50_i32 = arith.constant 50 : i32
    %43 = vector.broadcast %c50_i32 : i32 to vector<14x256xi32>
    %44 = arith.cmpi slt, %42, %43 : vector<14x256xi32>
    %c100_i32 = arith.constant 100 : i32
    %45 = vector.broadcast %c100_i32 : i32 to vector<14x256xi32>
    %46 = arith.cmpi slt, %42, %45 : vector<14x256xi32>
    %c1_i32 = arith.constant 1 : i32
    %c2_i32 = arith.constant 2 : i32
    %47 = vector.broadcast %c1_i32 : i32 to vector<14x256xi32>
    %48 = vector.broadcast %c2_i32 : i32 to vector<14x256xi32>
    %49 = arith.select %46, %47, %48 : vector<14x256xi1>, vector<14x256xi32>
    %c0_i32 = arith.constant 0 : i32
    %50 = vector.broadcast %c0_i32 : i32 to vector<14x256xi32>
    %51 = arith.select %44, %50, %49 : vector<14x256xi1>, vector<14x256xi32>
    %c14_i32 = arith.constant 14 : i32
    %52 = vector.broadcast %c14_i32 : i32 to vector<14x256xi32>
    %53 = arith.subi %52, %51 : vector<14x256xi32>
    %54 = arith.cmpi slt, %41, %53 : vector<14x256xi32>
    %55 = vector.shape_cast %54 : vector<14x256xi1> to vector<1x14x256xi1>
    %cst_20 = arith.constant 0.000000e+00 : f32
    %56 = vector.shape_cast %55 : vector<1x14x256xi1> to vector<1x14x256xi1>
    %57 = vector.broadcast %56 : vector<1x14x256xi1> to vector<8x14x256xi1>
    %58 = vector.broadcast %cst_20 : f32 to vector<8x14x256xf32>
    %59 = arith.select %57, %40, %58 : vector<8x14x256xi1>, vector<8x14x256xf32>
    %cst_21 = arith.constant dense<0xFF800000> : vector<8x256xf32>
    %60 = vector.multi_reduction <maximumf>, %59, %cst_21 [1] : vector<8x14x256xf32> to vector<8x256xf32>
    %c0_22 = arith.constant 0 : index
    %c0_23 = arith.constant 0 : index
    %61 = vector.load %arg4[%c0_22, %c0_23] : memref<8x256xf32, #tpu.memory_space<vmem>>, vector<8x256xf32>
    tpu.vector_store %arg4[%c0_22, %c0_23], %60 {strides = array<i32>} : memref<8x256xf32, #tpu.memory_space<vmem>>, vector<8x256xf32>,
    return
  }
  func.func @transform_0(%arg0: i32) -> (i32, i32, i32) {
    %c0_i32 = arith.constant 0 : i32
    %c0_i32_0 = arith.constant 0 : i32
    %c0_i32_1 = arith.constant 0 : i32
    return %arg0, %c0_i32, %c0_i32_0 : i32, i32, i32
  }
  func.func @transform_1(%arg0: i32) -> (i32, i32, i32) {
    %c0_i32 = arith.constant 0 : i32
    %c0_i32_0 = arith.constant 0 : i32
    %c0_i32_1 = arith.constant 0 : i32
    %c0_i32_2 = arith.constant 0 : i32
    return %c0_i32, %c0_i32_0, %c0_i32_1 : i32, i32, i32
  }
  func.func @transform_2(%arg0: i32) -> (i32, i32) {
    %c0_i32 = arith.constant 0 : i32
    %c0_i32_0 = arith.constant 0 : i32
    %c0_i32_1 = arith.constant 0 : i32
    return %c0_i32, %c0_i32_0 : i32, i32
  }
  func.func @transform_3(%arg0: i32) -> (i32, i32) {
    %c0_i32 = arith.constant 0 : i32
    %c0_i32_0 = arith.constant 0 : i32
    return %arg0, %c0_i32 : i32, i32
  }
}

</mosaic_0001>

<llo_original>
// kernel: cnn_forward.1
$region0: #{cnn_forward.1}
  #allocation0 [shape = 'u32[]', space=smem, size = 0x4, offset = 0x4, fixed_abs, tag = 'smem constant byte address 0x4 - core index']
  #allocation1 [shape = 'u32[144,128]{1,0:T(1,128)}', space=vmem, size = 0x12000, scoped, tag = 'internal scratch']
  %s0 = inlined_call_operand.vmem [shape: f32[16,18,8], index: 0, kind: input, shape index: {}]
  %s1 = inlined_call_operand.vmem [shape: bf16[5,8,256], index: 1, kind: input, shape index: {}]
  %s2 = inlined_call_operand.vmem [shape: f32[1,256], index: 2, kind: input, shape index: {}]
  %s3 = inlined_call_operand.hbm [shape: f32[16,256], index: 3, kind: output, shape index: {}]
  %s4 = sld [smem:[#allocation0]]
  $region45: #{cnn_forward.1} parent=0
    _
  %s6 = ssub.s32 1, %s4
  %s7 = scalar_select 0, %s6, %s4
  $region1: #{cnn_forward.1} parent=0
    #allocation2 [shape = 'u8[16384]{0}', space=vmem, size = 0x4000, scoped, tag = 'output window, operand 0']
    #allocation3 [shape = 's32[2]{0}', space=sflag, size = 0x8, scoped, tag = 'scoped memory for cnn_forward.1']
    %8 = vsyncpa [#allocation3], 0
    %s9 = scalar_lea.sflag [#allocation3], 1
    %10 = vsyncpa %s9, 0
    loop: start=0, step=1, limit=4
    $region2: #{cnn_forward.1} parent=1 // loop_pre_header
      _
    $region3: #{cnn_forward.1} parent=1 // loop_header
      %s12 = sphi 0, %s16
      %p13 = scmp.ge.s32.totalorder %s12, 4
      %s22 = sphi 0, %s24
      %s25 = sphi 0, %s22
      %s26 = sphi 0, %s25
      %s42 = sphi 0, %s26
      %s46 = sphi 0, %s46
      %s48 = sphi 0, %s46
      %s49 = sphi 0, %s48
      %s63 = sphi 0, %s49
      %s67 = sphi 0, %s67
      %s69 = sphi 0, %s67
      %s70 = sphi 0, %s69
      %s84 = sphi 0, %s70
      %s90 = sphi 0, %s92
      %s93 = sphi 0, %s90
      %s94 = sphi 0, %s93
      %s110 = sphi 0, %s94
    $region4: #{cnn_forward.1} parent=1 // loop_header_branch
      %15 = sbr.rel (%p13) target = $region8
    $region5: #{cnn_forward.1} parent=1 // loop_body
      %s17 = ssub.s32 %s12, 1
      %s18 = ssub.s32 %s12, 2
      %s19 = sadd.s32 %s12, 1
      %s20 = ssub.s32 %s12, %s19
      %p21 = scmp.eq.s32.totalorder %s20, 0
      %s23 = sadd.s32 %s22, 1
      %s24 = scalar_select %p21, %s22, %s23
      %p27 = pneg %p21
      %p28 = scmp.eq.s32.totalorder %s12, 1
      %p29 = por %p27, %p28
      %p30 = scmp.ne.s32.totalorder %s22, %s25
      %p31 = scmp.eq.s32.totalorder %s12, 0
      %p32 = por %p30, %p31
      %p33 = scmp.ne.s32.totalorder %s22, %s25
      %p34 = scmp.eq.s32.totalorder %s17, 1
      %p35 = por %p33, %p34
      %p36 = scmp.ne.s32.totalorder %s25, %s26
      %p37 = scmp.eq.s32.totalorder %s17, 0
      %p38 = por %p36, %p37
      %p39 = scmp.ne.s32.totalorder %s25, %s26
      %p40 = scmp.eq.s32.totalorder %s18, 1
      %p41 = por %p39, %p40
      %p43 = scmp.ne.s32.totalorder %s26, %s42
      %p44 = scmp.eq.s32.totalorder %s18, 0
      %p45 = por %p43, %p44
      %s47 = sadd.s32 %s46, 1
      %p50 = scmp.eq.s32.totalorder %s12, 1
      %p51 = scmp.ne.s32.totalorder %s46, %s48
      %p52 = scmp.eq.s32.totalorder %s12, 0
      %p53 = por %p51, %p52
      %p54 = scmp.ne.s32.totalorder %s46, %s48
      %p55 = scmp.eq.s32.totalorder %s17, 1
      %p56 = por %p54, %p55
      %p57 = scmp.ne.s32.totalorder %s48, %s49
      %p58 = scmp.eq.s32.totalorder %s17, 0
      %p59 = por %p57, %p58
      %p60 = scmp.ne.s32.totalorder %s48, %s49
      %p61 = scmp.eq.s32.totalorder %s18, 1
      %p62 = por %p60, %p61
      %p64 = scmp.ne.s32.totalorder %s49, %s63
      %p65 = scmp.eq.s32.totalorder %s18, 0
      %p66 = por %p64, %p65
      %s68 = sadd.s32 %s67, 1
      %p71 = scmp.eq.s32.totalorder %s12, 1
      %p72 = scmp.ne.s32.totalorder %s67, %s69
      %p73 = scmp.eq.s32.totalorder %s12, 0
      %p74 = por %p72, %p73
      %p75 = scmp.ne.s32.totalorder %s67, %s69
      %p76 = scmp.eq.s32.totalorder %s17, 1
      %p77 = por %p75, %p76
      %p78 = scmp.ne.s32.totalorder %s69, %s70
      %p79 = scmp.eq.s32.totalorder %s17, 0
      %p80 = por %p78, %p79
      %p81 = scmp.ne.s32.totalorder %s69, %s70
      %p82 = scmp.eq.s32.totalorder %s18, 1
      %p83 = por %p81, %p82
      %p85 = scmp.ne.s32.totalorder %s70, %s84
      %p86 = scmp.eq.s32.totalorder %s18, 0
      %p87 = por %p85, %p86
      %s88 = ssub.s32 %s12, %s19
      %p89 = scmp.eq.s32.totalorder %s88, 0
      %s91 = sadd.s32 %s90, 1
      %s92 = scalar_select %p89, %s90, %s91
      %p95 = pneg %p89
      %p96 = scmp.eq.s32.totalorder %s12, 1
      %p97 = por %p95, %p96
      %p98 = scmp.ne.s32.totalorder %s90, %s93
      %p99 = scmp.eq.s32.totalorder %s12, 0
      %p100 = por %p98, %p99
      %p101 = scmp.ne.s32.totalorder %s90, %s93
      %p102 = scmp.eq.s32.totalorder %s17, 1
      %p103 = por %p101, %p102
      %p104 = scmp.ne.s32.totalorder %s93, %s94
      %p105 = scmp.eq.s32.totalorder %s17, 0
      %p106 = por %p104, %p105
      %p107 = scmp.ne.s32.totalorder %s93, %s94
      %p108 = scmp.eq.s32.totalorder %s18, 1
      %p109 = por %p107, %p108
      %p111 = scmp.ne.s32.totalorder %s94, %s110
      %p112 = scmp.eq.s32.totalorder %s18, 0
      %p113 = por %p111, %p112
      %p114 = scmp.le.s32.totalorder 1, %s12
      %p115 = scmp.lt.s32.totalorder %s12, 3
      %p116 = pnand %p114, %p115
      %p117 = pneg %p116
      // Predicated region
      $region9: #{cnn_forward.1} parent=5 // pred_check
        _
      $region10: #{cnn_forward.1} parent=5 // pred_check_branch
        %119 = sbr.rel (%p116) target = $region12
      $region11: #{cnn_forward.1} parent=5 // pred_region
        %s120 = ssub.s32 %s12, 1
        // Predicated region
        $region13: #{cnn_forward.1} parent=11 // pred_check
          %p121 = pneg %p59
        $region14: #{cnn_forward.1} parent=11 // pred_check_branch
          %123 = sbr.rel (%p121) target = $region16
        $region15: #{cnn_forward.1} parent=11 // pred_region
          _
        $region16: #{cnn_forward.1} parent=11 // pred_fallthru
          _
        // Predicated region
        $region17: #{cnn_forward.1} parent=11 // pred_check
          %p124 = pneg %p80
        $region18: #{cnn_forward.1} parent=11 // pred_check_branch
          %126 = sbr.rel (%p124) target = $region20
        $region19: #{cnn_forward.1} parent=11 // pred_region
          _
        $region20: #{cnn_forward.1} parent=11 // pred_fallthru
          _
      $region12: #{cnn_forward.1} parent=5 // pred_fallthru
        _
      %p127 = scmp.lt.s32.totalorder %s12, 2
      // Predicated region
      $region21: #{cnn_forward.1} parent=5 // pred_check
        %p128 = pneg %p127
      $region22: #{cnn_forward.1} parent=5 // pred_check_branch
        %130 = sbr.rel (%p128) target = $region24
      $region23: #{cnn_forward.1} parent=5 // pred_region
        // Predicated region
        $region25: #{cnn_forward.1} parent=23 // pred_check
          %p131 = pneg %p32
        $region26: #{cnn_forward.1} parent=23 // pred_check_branch
          %133 = sbr.rel (%p131) target = $region28
        $region27: #{cnn_forward.1} parent=23 // pred_region
          %s134 = smul.u32 8, %s12
          %p135 = scmp.lt.s32.totalorder %s134, 15
          %s136 = scalar_select %p135, %s134, 15
          %s137 = smul.addr %s136, 3
          %s138 = smul.addr %s137, 8
          %s139 = scalar_lea.vmem %s0, %s138
          %s140 = smul.u32 8, %s12
        $region28: #{cnn_forward.1} parent=23 // pred_fallthru
          _
      $region24: #{cnn_forward.1} parent=5 // pred_fallthru
        _
      %p141 = scmp.le.s32.totalorder 1, %s12
      %p142 = scmp.lt.s32.totalorder %s12, 3
      %p143 = pnand %p141, %p142
      %p144 = pneg %p143
      // Predicated region
      $region29: #{cnn_forward.1} parent=5 // pred_check
        _
      $region30: #{cnn_forward.1} parent=5 // pred_check_branch
        %146 = sbr.rel (%p143) target = $region32
      $region31: #{cnn_forward.1} parent=5 // pred_region
        %s147 = ssub.s32 %s12, 1
        %s148 = smul.u32 8, %s17
        %p149 = scmp.lt.s32.totalorder %s148, 15
        %s150 = scalar_select %p149, %s148, 15
        %s151 = smul.addr %s150, 3
        %s152 = smul.addr %s151, 8
        %s153 = scalar_lea.vmem %s0, %s152
        %p154 = pneg %p38
        %p155 = pneg %p35
        %p156 = pneg %p59
        %p157 = pneg %p56
        %p158 = pneg %p80
        %p159 = pneg %p77
        %p160 = pneg %p106
        %p161 = pneg %p103
        %s162 = sand.u32 %s93, 1
        %s163 = scalar_lea.sflag [#allocation3], %s162
        %s164 = sand.u32 %s93, 1
        %s165 = smul.addr %s164, 16
        %s166 = scalar_lea.vmem [#allocation2], %s165
        %s167 = smul.u32 8, %s17
        %p168 = scmp.lt.s32.totalorder %s167, 15
        %s169 = scalar_select %p168, %s167, 15
        %s170 = smul.addr %s169, 3
        %s171 = smul.addr %s170, 8
        %s172 = scalar_lea.vmem %s0, %s171
        %s173 = smul.u32 8, %s17
        %v175 = vld [vmem:[%s172] sm:$0xff]
        %v176 = vld [vmem:[%s172 + $0x8] sm:$0xff]
        %v177 = vld [vmem:[%s172 + $0x10] sm:$0x3]
        %v178 = vld [vmem:[%s172 + $0x18] sm:$0xff]
        %v179 = vld [vmem:[%s172 + $0x20] sm:$0xff]
        %v180 = vld [vmem:[%s172 + $0x28] sm:$0x3]
        %v181 = vld [vmem:[%s172 + $0x30] sm:$0xff]
        %v182 = vld [vmem:[%s172 + $0x38] sm:$0xff]
        %v183 = vld [vmem:[%s172 + $0x40] sm:$0x3]
        %v184 = vld [vmem:[%s172 + $0x48] sm:$0xff]
        %v185 = vld [vmem:[%s172 + $0x50] sm:$0xff]
        %v186 = vld [vmem:[%s172 + $0x58] sm:$0x3]
        %v187 = vld [vmem:[%s172 + $0x60] sm:$0xff]
        %v188 = vld [vmem:[%s172 + $0x68] sm:$0xff]
        %v189 = vld [vmem:[%s172 + $0x70] sm:$0x3]
        %v190 = vld [vmem:[%s172 + $0x78] sm:$0xff]
        %v191 = vld [vmem:[%s172 + $0x80] sm:$0xff]
        %v192 = vld [vmem:[%s172 + $0x88] sm:$0x3]
        %v193 = vld [vmem:[%s172 + $0x90] sm:$0xff]
        %v194 = vld [vmem:[%s172 + $0x98] sm:$0xff]
        %v195 = vld [vmem:[%s172 + $0xa0] sm:$0x3]
        %v196 = vld [vmem:[%s172 + $0xa8] sm:$0xff]
        %v197 = vld [vmem:[%s172 + $0xb0] sm:$0xff]
        %v198 = vld [vmem:[%s172 + $0xb8] sm:$0x3]
        %v215 = vcombine.high %v175, %v175
        %v217 = vunpack.c.l.s4 1983009808
        %v218 = vunpack.c.0.s8 %v217
        %v219 = vlaneseq
        %v220 = vshrl.u32 %v219, 7
        %v221 = vsub.s32 %v218, %v220
        %v222 = vrot.slane %v175, %v221
        %v224 = vunpack.c.l.s4 1983009808
        %v225 = vunpack.c.0.s8 %v224
        %v226 = vlaneseq
        %v227 = vshrl.u32 %v226, 7
        %v228 = vsub.s32 %v225, %v227
        %v229 = vrot.slane %v215, %v228
        %v230 = vcombine.high %v222, %v222
        %v231 = vcombine.high %v229, %v229
        %v232 = vcombine.high %v176, %v176
        %v234 = vunpack.c.l.s4 1983009808
        %v235 = vunpack.c.0.s8 %v234
        %v236 = vlaneseq
        %v237 = vshrl.u32 %v236, 7
        %v238 = vsub.s32 %v235, %v237
        %v239 = vrot.slane %v176, %v238
        %v241 = vunpack.c.l.s4 1983009808
        %v242 = vunpack.c.0.s8 %v241
        %v243 = vlaneseq
        %v244 = vshrl.u32 %v243, 7
        %v245 = vsub.s32 %v242, %v244
        %v246 = vrot.slane %v232, %v245
        %v247 = vcombine.high %v239, %v239
        %v248 = vcombine.high %v178, %v178
        %v250 = vunpack.c.l.s4 1983009808
        %v251 = vunpack.c.0.s8 %v250
        %v252 = vlaneseq
        %v253 = vshrl.u32 %v252, 7
        %v254 = vsub.s32 %v251, %v253
        %v255 = vrot.slane %v178, %v254
        %v257 = vunpack.c.l.s4 1983009808
        %v258 = vunpack.c.0.s8 %v257
        %v259 = vlaneseq
        %v260 = vshrl.u32 %v259, 7
        %v261 = vsub.s32 %v258, %v260
        %v262 = vrot.slane %v248, %v261
        %v263 = vcombine.high %v255, %v255
        %v264 = vcombine.high %v262, %v262
        %v265 = vcombine.high %v179, %v179
        %v267 = vunpack.c.l.s4 1983009808
        %v268 = vunpack.c.0.s8 %v267
        %v269 = vlaneseq
        %v270 = vshrl.u32 %v269, 7
        %v271 = vsub.s32 %v268, %v270
        %v272 = vrot.slane %v179, %v271
        %v274 = vunpack.c.l.s4 1983009808
        %v275 = vunpack.c.0.s8 %v274
        %v276 = vlaneseq
        %v277 = vshrl.u32 %v276, 7
        %v278 = vsub.s32 %v275, %v277
        %v279 = vrot.slane %v265, %v278
        %v280 = vcombine.high %v272, %v272
        %v281 = vcombine.high %v181, %v181
        %v283 = vunpack.c.l.s4 1983009808
        %v284 = vunpack.c.0.s8 %v283
        %v285 = vlaneseq
        %v286 = vshrl.u32 %v285, 7
        %v287 = vsub.s32 %v284, %v286
        %v288 = vrot.slane %v181, %v287
        %v290 = vunpack.c.l.s4 1983009808
        %v291 = vunpack.c.0.s8 %v290
        %v292 = vlaneseq
        %v293 = vshrl.u32 %v292, 7
        %v294 = vsub.s32 %v291, %v293
        %v295 = vrot.slane %v281, %v294
        %v296 = vcombine.high %v288, %v288
        %v297 = vcombine.high %v295, %v295
        %v298 = vcombine.high %v182, %v182
        %v300 = vunpack.c.l.s4 1983009808
        %v301 = vunpack.c.0.s8 %v300
        %v302 = vlaneseq
        %v303 = vshrl.u32 %v302, 7
        %v304 = vsub.s32 %v301, %v303
        %v305 = vrot.slane %v182, %v304
        %v307 = vunpack.c.l.s4 1983009808
        %v308 = vunpack.c.0.s8 %v307
        %v309 = vlaneseq
        %v310 = vshrl.u32 %v309, 7
        %v311 = vsub.s32 %v308, %v310
        %v312 = vrot.slane %v298, %v311
        %v313 = vcombine.high %v305, %v305
        %v314 = vcombine.high %v184, %v184
        %v316 = vunpack.c.l.s4 1983009808
        %v317 = vunpack.c.0.s8 %v316
        %v318 = vlaneseq
        %v319 = vshrl.u32 %v318, 7
        %v320 = vsub.s32 %v317, %v319
        %v321 = vrot.slane %v184, %v320
        %v323 = vunpack.c.l.s4 1983009808
        %v324 = vunpack.c.0.s8 %v323
        %v325 = vlaneseq
        %v326 = vshrl.u32 %v325, 7
        %v327 = vsub.s32 %v324, %v326
        %v328 = vrot.slane %v314, %v327
        %v329 = vcombine.high %v321, %v321
        %v330 = vcombine.high %v328, %v328
        %v331 = vcombine.high %v185, %v185
        %v333 = vunpack.c.l.s4 1983009808
        %v334 = vunpack.c.0.s8 %v333
        %v335 = vlaneseq
        %v336 = vshrl.u32 %v335, 7
        %v337 = vsub.s32 %v334, %v336
        %v338 = vrot.slane %v185, %v337
        %v340 = vunpack.c.l.s4 1983009808
        %v341 = vunpack.c.0.s8 %v340
        %v342 = vlaneseq
        %v343 = vshrl.u32 %v342, 7
        %v344 = vsub.s32 %v341, %v343
        %v345 = vrot.slane %v331, %v344
        %v346 = vcombine.high %v338, %v338
        %v347 = vcombine.high %v187, %v187
        %v349 = vunpack.c.l.s4 1983009808
        %v350 = vunpack.c.0.s8 %v349
        %v351 = vlaneseq
        %v352 = vshrl.u32 %v351, 7
        %v353 = vsub.s32 %v350, %v352
        %v354 = vrot.slane %v187, %v353
        %v356 = vunpack.c.l.s4 1983009808
        %v357 = vunpack.c.0.s8 %v356
        %v358 = vlaneseq
        %v359 = vshrl.u32 %v358, 7
        %v360 = vsub.s32 %v357, %v359
        %v361 = vrot.slane %v347, %v360
        %v362 = vcombine.high %v354, %v354
        %v363 = vcombine.high %v361, %v361
        %v364 = vcombine.high %v188, %v188
        %v366 = vunpack.c.l.s4 1983009808
        %v367 = vunpack.c.0.s8 %v366
        %v368 = vlaneseq
        %v369 = vshrl.u32 %v368, 7
        %v370 = vsub.s32 %v367, %v369
        %v371 = vrot.slane %v188, %v370
        %v373 = vunpack.c.l.s4 1983009808
        %v374 = vunpack.c.0.s8 %v373
        %v375 = vlaneseq
        %v376 = vshrl.u32 %v375, 7
        %v377 = vsub.s32 %v374, %v376
        %v378 = vrot.slane %v364, %v377
        %v379 = vcombine.high %v371, %v371
        %v380 = vcombine.high %v190, %v190
        %v382 = vunpack.c.l.s4 1983009808
        %v383 = vunpack.c.0.s8 %v382
        %v384 = vlaneseq
        %v385 = vshrl.u32 %v384, 7
        %v386 = vsub.s32 %v383, %v385
        %v387 = vrot.slane %v190, %v386
        %v389 = vunpack.c.l.s4 1983009808
        %v390 = vunpack.c.0.s8 %v389
        %v391 = vlaneseq
        %v392 = vshrl.u32 %v391, 7
        %v393 = vsub.s32 %v390, %v392
        %v394 = vrot.slane %v380, %v393
        %v395 = vcombine.high %v387, %v387
        %v396 = vcombine.high %v394, %v394
        %v397 = vcombine.high %v191, %v191
        %v399 = vunpack.c.l.s4 1983009808
        %v400 = vunpack.c.0.s8 %v399
        %v401 = vlaneseq
        %v402 = vshrl.u32 %v401, 7
        %v403 = vsub.s32 %v400, %v402
        %v404 = vrot.slane %v191, %v403
        %v406 = vunpack.c.l.s4 1983009808
        %v407 = vunpack.c.0.s8 %v406
        %v408 = vlaneseq
        %v409 = vshrl.u32 %v408, 7
        %v410 = vsub.s32 %v407, %v409
        %v411 = vrot.slane %v397, %v410
        %v412 = vcombine.high %v404, %v404
        %v413 = vcombine.high %v193, %v193
        %v415 = vunpack.c.l.s4 1983009808
        %v416 = vunpack.c.0.s8 %v415
        %v417 = vlaneseq
        %v418 = vshrl.u32 %v417, 7
        %v419 = vsub.s32 %v416, %v418
        %v420 = vrot.slane %v193, %v419
        %v422 = vunpack.c.l.s4 1983009808
        %v423 = vunpack.c.0.s8 %v422
        %v424 = vlaneseq
        %v425 = vshrl.u32 %v424, 7
        %v426 = vsub.s32 %v423, %v425
        %v427 = vrot.slane %v413, %v426
        %v428 = vcombine.high %v420, %v420
        %v429 = vcombine.high %v427, %v427
        %v430 = vcombine.high %v194, %v194
        %v432 = vunpack.c.l.s4 1983009808
        %v433 = vunpack.c.0.s8 %v432
        %v434 = vlaneseq
        %v435 = vshrl.u32 %v434, 7
        %v436 = vsub.s32 %v433, %v435
        %v437 = vrot.slane %v194, %v436
        %v439 = vunpack.c.l.s4 1983009808
        %v440 = vunpack.c.0.s8 %v439
        %v441 = vlaneseq
        %v442 = vshrl.u32 %v441, 7
        %v443 = vsub.s32 %v440, %v442
        %v444 = vrot.slane %v430, %v443
        %v445 = vcombine.high %v437, %v437
        %v446 = vcombine.high %v196, %v196
        %v448 = vunpack.c.l.s4 1983009808
        %v449 = vunpack.c.0.s8 %v448
        %v450 = vlaneseq
        %v451 = vshrl.u32 %v450, 7
        %v452 = vsub.s32 %v449, %v451
        %v453 = vrot.slane %v196, %v452
        %v455 = vunpack.c.l.s4 1983009808
        %v456 = vunpack.c.0.s8 %v455
        %v457 = vlaneseq
        %v458 = vshrl.u32 %v457, 7
        %v459 = vsub.s32 %v456, %v458
        %v460 = vrot.slane %v446, %v459
        %v461 = vcombine.high %v453, %v453
        %v462 = vcombine.high %v460, %v460
        %v463 = vcombine.high %v197, %v197
        %v465 = vunpack.c.l.s4 1983009808
        %v466 = vunpack.c.0.s8 %v465
        %v467 = vlaneseq
        %v468 = vshrl.u32 %v467, 7
        %v469 = vsub.s32 %v466, %v468
        %v470 = vrot.slane %v197, %v469
        %v472 = vunpack.c.l.s4 1983009808
        %v473 = vunpack.c.0.s8 %v472
        %v474 = vlaneseq
        %v475 = vshrl.u32 %v474, 7
        %v476 = vsub.s32 %v473, %v475
        %v477 = vrot.slane %v463, %v476
        %v478 = vcombine.high %v470, %v470
        %v479 = vcombine.low %v222, %v230
        %v480 = vcombine.low %v229, %v231
        %v482 = vunpack.c.l.s4 1983009808
        %v483 = vunpack.c.0.s8 %v482
        %v484 = vlaneseq
        %v485 = vshrl.u32 %v484, 7
        %v486 = vsub.s32 %v483, %v485
        %v487 = vrot.slane %v479, %v486
        %v489 = vunpack.c.l.s4 1983009808
        %v490 = vunpack.c.0.s8 %v489
        %v491 = vlaneseq
        %v492 = vshrl.u32 %v491, 7
        %v493 = vsub.s32 %v490, %v492
        %v494 = vrot.slane %v480, %v493
        %v495 = vcombine.low %v487, %v494
        %v496 = vcombine.low %v239, %v247
        %v497 = vcombine.low %v246, %v255
        %v499 = vunpack.c.l.s4 1983009808
        %v500 = vunpack.c.0.s8 %v499
        %v501 = vlaneseq
        %v502 = vshrl.u32 %v501, 7
        %v503 = vsub.s32 %v500, %v502
        %v504 = vrot.slane %v496, %v503
        %v506 = vunpack.c.l.s4 1983009808
        %v507 = vunpack.c.0.s8 %v506
        %v508 = vlaneseq
        %v509 = vshrl.u32 %v508, 7
        %v510 = vsub.s32 %v507, %v509
        %v511 = vrot.slane %v497, %v510
        %v512 = vcombine.low %v504, %v511
        %v513 = vcombine.low %v263, %v262
        %v514 = vcombine.low %v264, %v272
        %v516 = vunpack.c.l.s4 1983009808
        %v517 = vunpack.c.0.s8 %v516
        %v518 = vlaneseq
        %v519 = vshrl.u32 %v518, 7
        %v520 = vsub.s32 %v517, %v519
        %v521 = vrot.slane %v513, %v520
        %v523 = vunpack.c.l.s4 1983009808
        %v524 = vunpack.c.0.s8 %v523
        %v525 = vlaneseq
        %v526 = vshrl.u32 %v525, 7
        %v527 = vsub.s32 %v524, %v526
        %v528 = vrot.slane %v514, %v527
        %v529 = vcombine.low %v521, %v528
        %v530 = vcombine.low %v280, %v279
        %v531 = vcombine.low %v288, %v296
        %v533 = vunpack.c.l.s4 1983009808
        %v534 = vunpack.c.0.s8 %v533
        %v535 = vlaneseq
        %v536 = vshrl.u32 %v535, 7
        %v537 = vsub.s32 %v534, %v536
        %v538 = vrot.slane %v530, %v537
        %v540 = vunpack.c.l.s4 1983009808
        %v541 = vunpack.c.0.s8 %v540
        %v542 = vlaneseq
        %v543 = vshrl.u32 %v542, 7
        %v544 = vsub.s32 %v541, %v543
        %v545 = vrot.slane %v531, %v544
        %v546 = vcombine.low %v538, %v545
        %v547 = vcombine.low %v295, %v297
        %v548 = vcombine.low %v305, %v313
        %v550 = vunpack.c.l.s4 1983009808
        %v551 = vunpack.c.0.s8 %v550
        %v552 = vlaneseq
        %v553 = vshrl.u32 %v552, 7
        %v554 = vsub.s32 %v551, %v553
        %v555 = vrot.slane %v547, %v554
        %v557 = vunpack.c.l.s4 1983009808
        %v558 = vunpack.c.0.s8 %v557
        %v559 = vlaneseq
        %v560 = vshrl.u32 %v559, 7
        %v561 = vsub.s32 %v558, %v560
        %v562 = vrot.slane %v548, %v561
        %v563 = vcombine.low %v555, %v562
        %v564 = vcombine.low %v312, %v321
        %v565 = vcombine.low %v329, %v328
        %v567 = vunpack.c.l.s4 1983009808
        %v568 = vunpack.c.0.s8 %v567
        %v569 = vlaneseq
        %v570 = vshrl.u32 %v569, 7
        %v571 = vsub.s32 %v568, %v570
        %v572 = vrot.slane %v564, %v571
        %v574 = vunpack.c.l.s4 1983009808
        %v575 = vunpack.c.0.s8 %v574
        %v576 = vlaneseq
        %v577 = vshrl.u32 %v576, 7
        %v578 = vsub.s32 %v575, %v577
        %v579 = vrot.slane %v565, %v578
        %v580 = vcombine.low %v572, %v579
        %v581 = vcombine.low %v330, %v338
        %v582 = vcombine.low %v346, %v345
        %v584 = vunpack.c.l.s4 1983009808
        %v585 = vunpack.c.0.s8 %v584
        %v586 = vlaneseq
        %v587 = vshrl.u32 %v586, 7
        %v588 = vsub.s32 %v585, %v587
        %v589 = vrot.slane %v581, %v588
        %v591 = vunpack.c.l.s4 1983009808
        %v592 = vunpack.c.0.s8 %v591
        %v593 = vlaneseq
        %v594 = vshrl.u32 %v593, 7
        %v595 = vsub.s32 %v592, %v594
        %v596 = vrot.slane %v582, %v595
        %v597 = vcombine.low %v589, %v596
        %v598 = vcombine.low %v354, %v362
        %v599 = vcombine.low %v361, %v363
        %v601 = vunpack.c.l.s4 1983009808
        %v602 = vunpack.c.0.s8 %v601
        %v603 = vlaneseq
        %v604 = vshrl.u32 %v603, 7
        %v605 = vsub.s32 %v602, %v604
        %v606 = vrot.slane %v598, %v605
        %v608 = vunpack.c.l.s4 1983009808
        %v609 = vunpack.c.0.s8 %v608
        %v610 = vlaneseq
        %v611 = vshrl.u32 %v610, 7
        %v612 = vsub.s32 %v609, %v611
        %v613 = vrot.slane %v599, %v612
        %v614 = vcombine.low %v606, %v613
        %v615 = vcombine.low %v371, %v379
        %v616 = vcombine.low %v378, %v387
        %v618 = vunpack.c.l.s4 1983009808
        %v619 = vunpack.c.0.s8 %v618
        %v620 = vlaneseq
        %v621 = vshrl.u32 %v620, 7
        %v622 = vsub.s32 %v619, %v621
        %v623 = vrot.slane %v615, %v622
        %v625 = vunpack.c.l.s4 1983009808
        %v626 = vunpack.c.0.s8 %v625
        %v627 = vlaneseq
        %v628 = vshrl.u32 %v627, 7
        %v629 = vsub.s32 %v626, %v628
        %v630 = vrot.slane %v616, %v629
        %v631 = vcombine.low %v623, %v630
        %v632 = vcombine.low %v395, %v394
        %v633 = vcombine.low %v396, %v404
        %v635 = vunpack.c.l.s4 1983009808
        %v636 = vunpack.c.0.s8 %v635
        %v637 = vlaneseq
        %v638 = vshrl.u32 %v637, 7
        %v639 = vsub.s32 %v636, %v638
        %v640 = vrot.slane %v632, %v639
        %v642 = vunpack.c.l.s4 1983009808
        %v643 = vunpack.c.0.s8 %v642
        %v644 = vlaneseq
        %v645 = vshrl.u32 %v644, 7
        %v646 = vsub.s32 %v643, %v645
        %v647 = vrot.slane %v633, %v646
        %v648 = vcombine.low %v640, %v647
        %v649 = vcombine.low %v412, %v411
        %v650 = vcombine.low %v420, %v428
        %v652 = vunpack.c.l.s4 1983009808
        %v653 = vunpack.c.0.s8 %v652
        %v654 = vlaneseq
        %v655 = vshrl.u32 %v654, 7
        %v656 = vsub.s32 %v653, %v655
        %v657 = vrot.slane %v649, %v656
        %v659 = vunpack.c.l.s4 1983009808
        %v660 = vunpack.c.0.s8 %v659
        %v661 = vlaneseq
        %v662 = vshrl.u32 %v661, 7
        %v663 = vsub.s32 %v660, %v662
        %v664 = vrot.slane %v650, %v663
        %v665 = vcombine.low %v657, %v664
        %v666 = vcombine.low %v427, %v429
        %v667 = vcombine.low %v437, %v445
        %v669 = vunpack.c.l.s4 1983009808
        %v670 = vunpack.c.0.s8 %v669
        %v671 = vlaneseq
        %v672 = vshrl.u32 %v671, 7
        %v673 = vsub.s32 %v670, %v672
        %v674 = vrot.slane %v666, %v673
        %v676 = vunpack.c.l.s4 1983009808
        %v677 = vunpack.c.0.s8 %v676
        %v678 = vlaneseq
        %v679 = vshrl.u32 %v678, 7
        %v680 = vsub.s32 %v677, %v679
        %v681 = vrot.slane %v667, %v680
        %v682 = vcombine.low %v674, %v681
        %v683 = vcombine.low %v444, %v453
        %v684 = vcombine.low %v461, %v460
        %v686 = vunpack.c.l.s4 1983009808
        %v687 = vunpack.c.0.s8 %v686
        %v688 = vlaneseq
        %v689 = vshrl.u32 %v688, 7
        %v690 = vsub.s32 %v687, %v689
        %v691 = vrot.slane %v683, %v690
        %v693 = vunpack.c.l.s4 1983009808
        %v694 = vunpack.c.0.s8 %v693
        %v695 = vlaneseq
        %v696 = vshrl.u32 %v695, 7
        %v697 = vsub.s32 %v694, %v696
        %v698 = vrot.slane %v684, %v697
        %v699 = vcombine.low %v691, %v698
        %v700 = vcombine.low %v462, %v470
        %v701 = vcombine.low %v478, %v477
        %v703 = vunpack.c.l.s4 1983009808
        %v704 = vunpack.c.0.s8 %v703
        %v705 = vlaneseq
        %v706 = vshrl.u32 %v705, 7
        %v707 = vsub.s32 %v704, %v706
        %v708 = vrot.slane %v700, %v707
        %v710 = vunpack.c.l.s4 1983009808
        %v711 = vunpack.c.0.s8 %v710
        %v712 = vlaneseq
        %v713 = vshrl.u32 %v712, 7
        %v714 = vsub.s32 %v711, %v713
        %v715 = vrot.slane %v701, %v714
        %v716 = vcombine.low %v708, %v715
        %v731 = vpack.c.bf16 %v512, %v495
        %v732 = vpack.c.bf16 %v546, %v529
        %v733 = vpack.c.bf16 %v580, %v563
        %v734 = vpack.c.bf16 %v614, %v597
        %v735 = vpack.c.bf16 %v648, %v631
        %v736 = vpack.c.bf16 %v682, %v665
        %v737 = vpack.c.bf16 %v716, %v699
        %v738 = vld [vmem:[%s1] sm:$0xff]
        %v739 = vcombine.high %v246, %v246
        %v740 = vcombine.high %v279, %v279
        %v741 = vcombine.high %v312, %v312
        %v742 = vcombine.high %v345, %v345
        %v743 = vcombine.high %v378, %v378
        %v744 = vcombine.high %v411, %v411
        %v745 = vcombine.high %v444, %v444
        %v746 = vcombine.high %v477, %v477
        %vm747 = vcmask 1040384
        %vm748 = vcmask 1042434
        %vm749 = vmor %vm747, %vm748
        %vm750 = vcmask 1044484
        %vm751 = vmor %vm749, %vm750
        %vm752 = vcmask 1046534
        %vm753 = vmor %vm751, %vm752
        %v754 = vrot.slane %v222, 7
        %v755 = vrot.slane %v754, 2
        %v756 = vrot.slane %v230, 7
        %v757 = vsel %vm753, %v755, %v756
        %v758 = vrot.slane %v756, 2
        %v759 = vrot.slane %v229, 7
        %v760 = vsel %vm753, %v758, %v759
        %v761 = vrot.slane %v759, 2
        %v762 = vrot.slane %v231, 7
        %v763 = vsel %vm753, %v761, %v762
        %v764 = vrot.slane %v762, 2
        %v765 = vrot.slane %v239, 7
        %v766 = vsel %vm753, %v764, %v765
        %v767 = vrot.slane %v765, 2
        %v768 = vrot.slane %v247, 7
        %v769 = vsel %vm753, %v767, %v768
        %v770 = vrot.slane %v768, 2
        %v771 = vrot.slane %v246, 7
        %v772 = vsel %vm753, %v770, %v771
        %v773 = vrot.slane %v771, 2
        %v774 = vrot.slane %v739, 7
        %v775 = vsel %vm753, %v773, %v774
        %v776 = vrot.slane %v255, 7
        %v777 = vrot.slane %v776, 2
        %v778 = vrot.slane %v263, 7
        %v779 = vsel %vm753, %v777, %v778
        %v780 = vrot.slane %v778, 2
        %v781 = vrot.slane %v262, 7
        %v782 = vsel %vm753, %v780, %v781
        %v783 = vrot.slane %v781, 2
        %v784 = vrot.slane %v264, 7
        %v785 = vsel %vm753, %v783, %v784
        %v786 = vrot.slane %v784, 2
        %v787 = vrot.slane %v272, 7
        %v788 = vsel %vm753, %v786, %v787
        %v789 = vrot.slane %v787, 2
        %v790 = vrot.slane %v280, 7
        %v791 = vsel %vm753, %v789, %v790
        %v792 = vrot.slane %v790, 2
        %v793 = vrot.slane %v279, 7
        %v794 = vsel %vm753, %v792, %v793
        %v795 = vrot.slane %v793, 2
        %v796 = vrot.slane %v740, 7
        %v797 = vsel %vm753, %v795, %v796
        %v798 = vrot.slane %v288, 7
        %v799 = vrot.slane %v798, 2
        %v800 = vrot.slane %v296, 7
        %v801 = vsel %vm753, %v799, %v800
        %v802 = vrot.slane %v800, 2
        %v803 = vrot.slane %v295, 7
        %v804 = vsel %vm753, %v802, %v803
        %v805 = vrot.slane %v803, 2
        %v806 = vrot.slane %v297, 7
        %v807 = vsel %vm753, %v805, %v806
        %v808 = vrot.slane %v806, 2
        %v809 = vrot.slane %v305, 7
        %v810 = vsel %vm753, %v808, %v809
        %v811 = vrot.slane %v809, 2
        %v812 = vrot.slane %v313, 7
        %v813 = vsel %vm753, %v811, %v812
        %v814 = vrot.slane %v812, 2
        %v815 = vrot.slane %v312, 7
        %v816 = vsel %vm753, %v814, %v815
        %v817 = vrot.slane %v815, 2
        %v818 = vrot.slane %v741, 7
        %v819 = vsel %vm753, %v817, %v818
        %v820 = vrot.slane %v321, 7
        %v821 = vrot.slane %v820, 2
        %v822 = vrot.slane %v329, 7
        %v823 = vsel %vm753, %v821, %v822
        %v824 = vrot.slane %v822, 2
        %v825 = vrot.slane %v328, 7
        %v826 = vsel %vm753, %v824, %v825
        %v827 = vrot.slane %v825, 2
        %v828 = vrot.slane %v330, 7
        %v829 = vsel %vm753, %v827, %v828
        %v830 = vrot.slane %v828, 2
        %v831 = vrot.slane %v338, 7
        %v832 = vsel %vm753, %v830, %v831
        %v833 = vrot.slane %v831, 2
        %v834 = vrot.slane %v346, 7
        %v835 = vsel %vm753, %v833, %v834
        %v836 = vrot.slane %v834, 2
        %v837 = vrot.slane %v345, 7
        %v838 = vsel %vm753, %v836, %v837
        %v839 = vrot.slane %v837, 2
        %v840 = vrot.slane %v742, 7
        %v841 = vsel %vm753, %v839, %v840
        %v842 = vrot.slane %v354, 7
        %v843 = vrot.slane %v842, 2
        %v844 = vrot.slane %v362, 7
        %v845 = vsel %vm753, %v843, %v844
        %v846 = vrot.slane %v844, 2
        %v847 = vrot.slane %v361, 7
        %v848 = vsel %vm753, %v846, %v847
        %v849 = vrot.slane %v847, 2
        %v850 = vrot.slane %v363, 7
        %v851 = vsel %vm753, %v849, %v850
        %v852 = vrot.slane %v850, 2
        %v853 = vrot.slane %v371, 7
        %v854 = vsel %vm753, %v852, %v853
        %v855 = vrot.slane %v853, 2
        %v856 = vrot.slane %v379, 7
        %v857 = vsel %vm753, %v855, %v856
        %v858 = vrot.slane %v856, 2
        %v859 = vrot.slane %v378, 7
        %v860 = vsel %vm753, %v858, %v859
        %v861 = vrot.slane %v859, 2
        %v862 = vrot.slane %v743, 7
        %v863 = vsel %vm753, %v861, %v862
        %v864 = vrot.slane %v387, 7
        %v865 = vrot.slane %v864, 2
        %v866 = vrot.slane %v395, 7
        %v867 = vsel %vm753, %v865, %v866
        %v868 = vrot.slane %v866, 2
        %v869 = vrot.slane %v394, 7
        %v870 = vsel %vm753, %v868, %v869
        %v871 = vrot.slane %v869, 2
        %v872 = vrot.slane %v396, 7
        %v873 = vsel %vm753, %v871, %v872
        %v874 = vrot.slane %v872, 2
        %v875 = vrot.slane %v404, 7
        %v876 = vsel %vm753, %v874, %v875
        %v877 = vrot.slane %v875, 2
        %v878 = vrot.slane %v412, 7
        %v879 = vsel %vm753, %v877, %v878
        %v880 = vrot.slane %v878, 2
        %v881 = vrot.slane %v411, 7
        %v882 = vsel %vm753, %v880, %v881
        %v883 = vrot.slane %v881, 2
        %v884 = vrot.slane %v744, 7
        %v885 = vsel %vm753, %v883, %v884
        %v886 = vrot.slane %v420, 7
        %v887 = vrot.slane %v886, 2
        %v888 = vrot.slane %v428, 7
        %v889 = vsel %vm753, %v887, %v888
        %v890 = vrot.slane %v888, 2
        %v891 = vrot.slane %v427, 7
        %v892 = vsel %vm753, %v890, %v891
        %v893 = vrot.slane %v891, 2
        %v894 = vrot.slane %v429, 7
        %v895 = vsel %vm753, %v893, %v894
        %v896 = vrot.slane %v894, 2
        %v897 = vrot.slane %v437, 7
        %v898 = vsel %vm753, %v896, %v897
        %v899 = vrot.slane %v897, 2
        %v900 = vrot.slane %v445, 7
        %v901 = vsel %vm753, %v899, %v900
        %v902 = vrot.slane %v900, 2
        %v903 = vrot.slane %v444, 7
        %v904 = vsel %vm753, %v902, %v903
        %v905 = vrot.slane %v903, 2
        %v906 = vrot.slane %v745, 7
        %v907 = vsel %vm753, %v905, %v906
        %v908 = vrot.slane %v453, 7
        %v909 = vrot.slane %v908, 2
        %v910 = vrot.slane %v461, 7
        %v911 = vsel %vm753, %v909, %v910
        %v912 = vrot.slane %v910, 2
        %v913 = vrot.slane %v460, 7
        %v914 = vsel %vm753, %v912, %v913
        %v915 = vrot.slane %v913, 2
        %v916 = vrot.slane %v462, 7
        %v917 = vsel %vm753, %v915, %v916
        %v918 = vrot.slane %v916, 2
        %v919 = vrot.slane %v470, 7
        %v920 = vsel %vm753, %v918, %v919
        %v921 = vrot.slane %v919, 2
        %v922 = vrot.slane %v478, 7
        %v923 = vsel %vm753, %v921, %v922
        %v924 = vrot.slane %v922, 2
        %v925 = vrot.slane %v477, 7
        %v926 = vsel %vm753, %v924, %v925
        %v927 = vrot.slane %v925, 2
        %v928 = vrot.slane %v746, 7
        %v929 = vsel %vm753, %v927, %v928
        %v930 = vcombine.low %v757, %v760
        %v931 = vcombine.low %v763, %v766
        %v933 = vunpack.c.l.s4 1983009808
        %v934 = vunpack.c.0.s8 %v933
        %v935 = vlaneseq
        %v936 = vshrl.u32 %v935, 7
        %v937 = vsub.s32 %v934, %v936
        %v938 = vrot.slane %v930, %v937
        %v940 = vunpack.c.l.s4 1983009808
        %v941 = vunpack.c.0.s8 %v940
        %v942 = vlaneseq
        %v943 = vshrl.u32 %v942, 7
        %v944 = vsub.s32 %v941, %v943
        %v945 = vrot.slane %v931, %v944
        %v946 = vcombine.low %v938, %v945
        %v947 = vcombine.low %v769, %v772
        %v948 = vcombine.low %v775, %v779
        %v950 = vunpack.c.l.s4 1983009808
        %v951 = vunpack.c.0.s8 %v950
        %v952 = vlaneseq
        %v953 = vshrl.u32 %v952, 7
        %v954 = vsub.s32 %v951, %v953
        %v955 = vrot.slane %v947, %v954
        %v957 = vunpack.c.l.s4 1983009808
        %v958 = vunpack.c.0.s8 %v957
        %v959 = vlaneseq
        %v960 = vshrl.u32 %v959, 7
        %v961 = vsub.s32 %v958, %v960
        %v962 = vrot.slane %v948, %v961
        %v963 = vcombine.low %v955, %v962
        %v964 = vcombine.low %v782, %v785
        %v965 = vcombine.low %v788, %v791
        %v967 = vunpack.c.l.s4 1983009808
        %v968 = vunpack.c.0.s8 %v967
        %v969 = vlaneseq
        %v970 = vshrl.u32 %v969, 7
        %v971 = vsub.s32 %v968, %v970
        %v972 = vrot.slane %v964, %v971
        %v974 = vunpack.c.l.s4 1983009808
        %v975 = vunpack.c.0.s8 %v974
        %v976 = vlaneseq
        %v977 = vshrl.u32 %v976, 7
        %v978 = vsub.s32 %v975, %v977
        %v979 = vrot.slane %v965, %v978
        %v980 = vcombine.low %v972, %v979
        %v981 = vcombine.low %v794, %v797
        %v982 = vcombine.low %v801, %v804
        %v984 = vunpack.c.l.s4 1983009808
        %v985 = vunpack.c.0.s8 %v984
        %v986 = vlaneseq
        %v987 = vshrl.u32 %v986, 7
        %v988 = vsub.s32 %v985, %v987
        %v989 = vrot.slane %v981, %v988
        %v991 = vunpack.c.l.s4 1983009808
        %v992 = vunpack.c.0.s8 %v991
        %v993 = vlaneseq
        %v994 = vshrl.u32 %v993, 7
        %v995 = vsub.s32 %v992, %v994
        %v996 = vrot.slane %v982, %v995
        %v997 = vcombine.low %v989, %v996
        %v998 = vcombine.low %v807, %v810
        %v999 = vcombine.low %v813, %v816
        %v1001 = vunpack.c.l.s4 1983009808
        %v1002 = vunpack.c.0.s8 %v1001
        %v1003 = vlaneseq
        %v1004 = vshrl.u32 %v1003, 7
        %v1005 = vsub.s32 %v1002, %v1004
        %v1006 = vrot.slane %v998, %v1005
        %v1008 = vunpack.c.l.s4 1983009808
        %v1009 = vunpack.c.0.s8 %v1008
        %v1010 = vlaneseq
        %v1011 = vshrl.u32 %v1010, 7
        %v1012 = vsub.s32 %v1009, %v1011
        %v1013 = vrot.slane %v999, %v1012
        %v1014 = vcombine.low %v1006, %v1013
        %v1015 = vcombine.low %v819, %v823
        %v1016 = vcombine.low %v826, %v829
        %v1018 = vunpack.c.l.s4 1983009808
        %v1019 = vunpack.c.0.s8 %v1018
        %v1020 = vlaneseq
        %v1021 = vshrl.u32 %v1020, 7
        %v1022 = vsub.s32 %v1019, %v1021
        %v1023 = vrot.slane %v1015, %v1022
        %v1025 = vunpack.c.l.s4 1983009808
        %v1026 = vunpack.c.0.s8 %v1025
        %v1027 = vlaneseq
        %v1028 = vshrl.u32 %v1027, 7
        %v1029 = vsub.s32 %v1026, %v1028
        %v1030 = vrot.slane %v1016, %v1029
        %v1031 = vcombine.low %v1023, %v1030
        %v1032 = vcombine.low %v832, %v835
        %v1033 = vcombine.low %v838, %v841
        %v1035 = vunpack.c.l.s4 1983009808
        %v1036 = vunpack.c.0.s8 %v1035
        %v1037 = vlaneseq
        %v1038 = vshrl.u32 %v1037, 7
        %v1039 = vsub.s32 %v1036, %v1038
        %v1040 = vrot.slane %v1032, %v1039
        %v1042 = vunpack.c.l.s4 1983009808
        %v1043 = vunpack.c.0.s8 %v1042
        %v1044 = vlaneseq
        %v1045 = vshrl.u32 %v1044, 7
        %v1046 = vsub.s32 %v1043, %v1045
        %v1047 = vrot.slane %v1033, %v1046
        %v1048 = vcombine.low %v1040, %v1047
        %v1049 = vcombine.low %v845, %v848
        %v1050 = vcombine.low %v851, %v854
        %v1052 = vunpack.c.l.s4 1983009808
        %v1053 = vunpack.c.0.s8 %v1052
        %v1054 = vlaneseq
        %v1055 = vshrl.u32 %v1054, 7
        %v1056 = vsub.s32 %v1053, %v1055
        %v1057 = vrot.slane %v1049, %v1056
        %v1059 = vunpack.c.l.s4 1983009808
        %v1060 = vunpack.c.0.s8 %v1059
        %v1061 = vlaneseq
        %v1062 = vshrl.u32 %v1061, 7
        %v1063 = vsub.s32 %v1060, %v1062
        %v1064 = vrot.slane %v1050, %v1063
        %v1065 = vcombine.low %v1057, %v1064
        %v1066 = vcombine.low %v857, %v860
        %v1067 = vcombine.low %v863, %v867
        %v1069 = vunpack.c.l.s4 1983009808
        %v1070 = vunpack.c.0.s8 %v1069
        %v1071 = vlaneseq
        %v1072 = vshrl.u32 %v1071, 7
        %v1073 = vsub.s32 %v1070, %v1072
        %v1074 = vrot.slane %v1066, %v1073
        %v1076 = vunpack.c.l.s4 1983009808
        %v1077 = vunpack.c.0.s8 %v1076
        %v1078 = vlaneseq
        %v1079 = vshrl.u32 %v1078, 7
        %v1080 = vsub.s32 %v1077, %v1079
        %v1081 = vrot.slane %v1067, %v1080
        %v1082 = vcombine.low %v1074, %v1081
        %v1083 = vcombine.low %v870, %v873
        %v1084 = vcombine.low %v876, %v879
        %v1086 = vunpack.c.l.s4 1983009808
        %v1087 = vunpack.c.0.s8 %v1086
        %v1088 = vlaneseq
        %v1089 = vshrl.u32 %v1088, 7
        %v1090 = vsub.s32 %v1087, %v1089
        %v1091 = vrot.slane %v1083, %v1090
        %v1093 = vunpack.c.l.s4 1983009808
        %v1094 = vunpack.c.0.s8 %v1093
        %v1095 = vlaneseq
        %v1096 = vshrl.u32 %v1095, 7
        %v1097 = vsub.s32 %v1094, %v1096
        %v1098 = vrot.slane %v1084, %v1097
        %v1099 = vcombine.low %v1091, %v1098
        %v1100 = vcombine.low %v882, %v885
        %v1101 = vcombine.low %v889, %v892
        %v1103 = vunpack.c.l.s4 1983009808
        %v1104 = vunpack.c.0.s8 %v1103
        %v1105 = vlaneseq
        %v1106 = vshrl.u32 %v1105, 7
        %v1107 = vsub.s32 %v1104, %v1106
        %v1108 = vrot.slane %v1100, %v1107
        %v1110 = vunpack.c.l.s4 1983009808
        %v1111 = vunpack.c.0.s8 %v1110
        %v1112 = vlaneseq
        %v1113 = vshrl.u32 %v1112, 7
        %v1114 = vsub.s32 %v1111, %v1113
        %v1115 = vrot.slane %v1101, %v1114
        %v1116 = vcombine.low %v1108, %v1115
        %v1117 = vcombine.low %v895, %v898
        %v1118 = vcombine.low %v901, %v904
        %v1120 = vunpack.c.l.s4 1983009808
        %v1121 = vunpack.c.0.s8 %v1120
        %v1122 = vlaneseq
        %v1123 = vshrl.u32 %v1122, 7
        %v1124 = vsub.s32 %v1121, %v1123
        %v1125 = vrot.slane %v1117, %v1124
        %v1127 = vunpack.c.l.s4 1983009808
        %v1128 = vunpack.c.0.s8 %v1127
        %v1129 = vlaneseq
        %v1130 = vshrl.u32 %v1129, 7
        %v1131 = vsub.s32 %v1128, %v1130
        %v1132 = vrot.slane %v1118, %v1131
        %v1133 = vcombine.low %v1125, %v1132
        %v1134 = vcombine.low %v907, %v911
        %v1135 = vcombine.low %v914, %v917
        %v1137 = vunpack.c.l.s4 1983009808
        %v1138 = vunpack.c.0.s8 %v1137
        %v1139 = vlaneseq
        %v1140 = vshrl.u32 %v1139, 7
        %v1141 = vsub.s32 %v1138, %v1140
        %v1142 = vrot.slane %v1134, %v1141
        %v1144 = vunpack.c.l.s4 1983009808
        %v1145 = vunpack.c.0.s8 %v1144
        %v1146 = vlaneseq
        %v1147 = vshrl.u32 %v1146, 7
        %v1148 = vsub.s32 %v1145, %v1147
        %v1149 = vrot.slane %v1135, %v1148
        %v1150 = vcombine.low %v1142, %v1149
        %v1151 = vcombine.low %v920, %v923
        %v1152 = vcombine.low %v926, %v929
        %v1154 = vunpack.c.l.s4 1983009808
        %v1155 = vunpack.c.0.s8 %v1154
        %v1156 = vlaneseq
        %v1157 = vshrl.u32 %v1156, 7
        %v1158 = vsub.s32 %v1155, %v1157
        %v1159 = vrot.slane %v1151, %v1158
        %v1161 = vunpack.c.l.s4 1983009808
        %v1162 = vunpack.c.0.s8 %v1161
        %v1163 = vlaneseq
        %v1164 = vshrl.u32 %v1163, 7
        %v1165 = vsub.s32 %v1162, %v1164
        %v1166 = vrot.slane %v1152, %v1165
        %v1167 = vcombine.low %v1159, %v1166
        %v1182 = vpack.c.bf16 %v963, %v946
        %v1183 = vpack.c.bf16 %v997, %v980
        %v1184 = vpack.c.bf16 %v1031, %v1014
        %v1185 = vpack.c.bf16 %v1065, %v1048
        %v1186 = vpack.c.bf16 %v1099, %v1082
        %v1187 = vpack.c.bf16 %v1133, %v1116
        %v1188 = vpack.c.bf16 %v1167, %v1150
        %s1189 = scalar_lea.vmem %s1, 8
        %v1190 = vld [vmem:[%s1189] sm:$0xff]
        %v1192 = vunpack.c.l.b16 %v1190
        %v1193 = vunpack.c.h.b16 %v1190
        %v1194 = vpack.c.b16 %v1192, %v1192
        %v1195 = vpack.c.b16 %v1193, %v1193
        %vm1196 = vcmask 64512
        %v1198 = vsel %vm1196, %v1182, 0
        %v1201 = vsel %vm1196, %v1183, 0
        %v1204 = vsel %vm1196, %v1184, 0
        %v1207 = vsel %vm1196, %v1185, 0
        %v1210 = vsel %vm1196, %v1186, 0
        %v1213 = vsel %vm1196, %v1187, 0
        %v1216 = vsel %vm1196, %v1188, 0
        %vm1218 = vcmask 1043456
        %v1220 = vsel %vm1218, %v1194, 0
        %v1223 = vsel %vm1218, %v1195, 0
        %1225 = vmatprep.subr.bf16.mxu0 0
        %1226 = vmatpush1.bf16.msra.mxu0 0
        %1227 = vmatprep.subr.bf16.mxu0 0
        %1228 = vmatpush1.bf16.msra.mxu0 0
        %1229 = vmatprep.subr.bf16.mxu0 0
        %1230 = vmatpush1.bf16.msra.mxu0 0
        %1231 = vmatprep.subr.bf16.mxu0 0
        %1232 = vmatpush1.bf16.msra.mxu0 0
        %1233 = vmatprep.subr.bf16.mxu0 0
        %1234 = vmatpush1.bf16.msra.mxu0 0
        %1235 = vmatprep.subr.bf16.mxu0 0
        %1236 = vmatpush1.bf16.msra.mxu0 0
        %1237 = vmatprep.subr.bf16.mxu0 0
        %1238 = vmatpush1.bf16.msra.mxu0 0
        %1239 = vmatprep.subr.bf16.mxu0 %v1223
        %1240 = vmatpush1.bf16.msra.mxu0 %v1220
        %1241 = vmatprep.subr.bf16.mxu0 0
        %1242 = vmatpush2.bf16.msra.mxu0 0
        %1243 = vmatprep.subr.bf16.mxu0 0
        %1244 = vmatpush2.bf16.msra.mxu0 0
        %1245 = vmatprep.subr.bf16.mxu0 0
        %1246 = vmatpush2.bf16.msra.mxu0 0
        %1247 = vmatprep.subr.bf16.mxu0 0
        %1248 = vmatpush2.bf16.msra.mxu0 0
        %1249 = vmatprep.subr.bf16.mxu0 0
        %1250 = vmatpush2.bf16.msra.mxu0 0
        %1251 = vmatprep.subr.bf16.mxu0 0
        %1252 = vmatpush2.bf16.msra.mxu0 0
        %1253 = vmatprep.subr.bf16.mxu0 0
        %1254 = vmatpush2.bf16.msra.mxu0 0
        %1255 = vmatprep.subr.bf16.mxu0 0
        %1256 = vmatpush2.bf16.msra.mxu0 0
        %1257 = vmatprep.mubr.bf16.mxu0 0
        %1258 = vmatmul.mubr.bf16.gmra.mxu0 %v1198
        %v1259 = vpop.f32.mrf.mxu0
        %v1260 = vadd.f32 0.0, %v1259
        %v1261 = vpop.f32.mrf.mxu0
        %v1262 = vadd.f32 0.0, %v1261
        %v1263 = vpop.f32.mrf.mxu0
        %v1264 = vadd.f32 0.0, %v1263
        %v1265 = vpop.f32.mrf.mxu0
        %v1266 = vadd.f32 0.0, %v1265
        %1267 = vmatprep.mubr.bf16.mxu0 0
        %1268 = vmatmul.mubr.bf16.gmra.mxu0 %v1201
        %v1269 = vpop.f32.mrf.mxu0
        %v1270 = vadd.f32 0.0, %v1269
        %v1271 = vpop.f32.mrf.mxu0
        %v1272 = vadd.f32 0.0, %v1271
        %v1273 = vpop.f32.mrf.mxu0
        %v1274 = vadd.f32 0.0, %v1273
        %v1275 = vpop.f32.mrf.mxu0
        %v1276 = vadd.f32 0.0, %v1275
        %1277 = vmatprep.mubr.bf16.mxu0 0
        %1278 = vmatmul.mubr.bf16.gmra.mxu0 %v1204
        %v1279 = vpop.f32.mrf.mxu0
        %v1280 = vadd.f32 0.0, %v1279
        %v1281 = vpop.f32.mrf.mxu0
        %v1282 = vadd.f32 0.0, %v1281
        %v1283 = vpop.f32.mrf.mxu0
        %v1284 = vadd.f32 0.0, %v1283
        %v1285 = vpop.f32.mrf.mxu0
        %v1286 = vadd.f32 0.0, %v1285
        %1287 = vmatprep.mubr.bf16.mxu0 0
        %1288 = vmatmul.mubr.bf16.gmra.mxu0 %v1207
        %v1289 = vpop.f32.mrf.mxu0
        %v1290 = vadd.f32 0.0, %v1289
        %v1291 = vpop.f32.mrf.mxu0
        %v1292 = vadd.f32 0.0, %v1291
        %v1293 = vpop.f32.mrf.mxu0
        %v1294 = vadd.f32 0.0, %v1293
        %v1295 = vpop.f32.mrf.mxu0
        %v1296 = vadd.f32 0.0, %v1295
        %1297 = vmatprep.mubr.bf16.mxu0 0
        %1298 = vmatmul.mubr.bf16.gmra.mxu0 %v1210
        %v1299 = vpop.f32.mrf.mxu0
        %v1300 = vadd.f32 0.0, %v1299
        %v1301 = vpop.f32.mrf.mxu0
        %v1302 = vadd.f32 0.0, %v1301
        %v1303 = vpop.f32.mrf.mxu0
        %v1304 = vadd.f32 0.0, %v1303
        %v1305 = vpop.f32.mrf.mxu0
        %v1306 = vadd.f32 0.0, %v1305
        %1307 = vmatprep.mubr.bf16.mxu0 0
        %1308 = vmatmul.mubr.bf16.gmra.mxu0 %v1213
        %v1309 = vpop.f32.mrf.mxu0
        %v1310 = vadd.f32 0.0, %v1309
        %v1311 = vpop.f32.mrf.mxu0
        %v1312 = vadd.f32 0.0, %v1311
        %v1313 = vpop.f32.mrf.mxu0
        %v1314 = vadd.f32 0.0, %v1313
        %v1315 = vpop.f32.mrf.mxu0
        %v1316 = vadd.f32 0.0, %v1315
        %1317 = vmatprep.mubr.bf16.mxu0 0
        %1318 = vmatmul.mubr.bf16.gmra.mxu0 %v1216
        %v1319 = vpop.f32.mrf.mxu0
        %v1320 = vadd.f32 0.0, %v1319
        %v1321 = vpop.f32.mrf.mxu0
        %v1322 = vadd.f32 0.0, %v1321
        %v1323 = vpop.f32.mrf.mxu0
        %v1324 = vadd.f32 0.0, %v1323
        %v1325 = vpop.f32.mrf.mxu0
        %v1326 = vadd.f32 0.0, %v1325
        %1327 = vdwg.mxu0
        %v1329 = vunpack.c.l.b16 %v738
        %v1330 = vunpack.c.h.b16 %v738
        %v1331 = vpack.c.b16 %v1329, %v1329
        %v1332 = vpack.c.b16 %v1330, %v1330
        %v1334 = vsel %vm1196, %v731, 0
        %v1337 = vsel %vm1196, %v732, 0
        %v1340 = vsel %vm1196, %v733, 0
        %v1343 = vsel %vm1196, %v734, 0
        %v1346 = vsel %vm1196, %v735, 0
        %v1349 = vsel %vm1196, %v736, 0
        %v1352 = vsel %vm1196, %v737, 0
        %v1355 = vsel %vm1218, %v1331, 0
        %v1358 = vsel %vm1218, %v1332, 0
        %1360 = vmatprep.subr.bf16.mxu0 0
        %1361 = vmatpush1.bf16.msra.mxu0 0
        %1362 = vmatprep.subr.bf16.mxu0 0
        %1363 = vmatpush1.bf16.msra.mxu0 0
        %1364 = vmatprep.subr.bf16.mxu0 0
        %1365 = vmatpush1.bf16.msra.mxu0 0
        %1366 = vmatprep.subr.bf16.mxu0 0
        %1367 = vmatpush1.bf16.msra.mxu0 0
        %1368 = vmatprep.subr.bf16.mxu0 0
        %1369 = vmatpush1.bf16.msra.mxu0 0
        %1370 = vmatprep.subr.bf16.mxu0 0
        %1371 = vmatpush1.bf16.msra.mxu0 0
        %1372 = vmatprep.subr.bf16.mxu0 0
        %1373 = vmatpush1.bf16.msra.mxu0 0
        %1374 = vmatprep.subr.bf16.mxu0 %v1358
        %1375 = vmatpush1.bf16.msra.mxu0 %v1355
        %1376 = vmatprep.subr.bf16.mxu0 0
        %1377 = vmatpush2.bf16.msra.mxu0 0
        %1378 = vmatprep.subr.bf16.mxu0 0
        %1379 = vmatpush2.bf16.msra.mxu0 0
        %1380 = vmatprep.subr.bf16.mxu0 0
        %1381 = vmatpush2.bf16.msra.mxu0 0
        %1382 = vmatprep.subr.bf16.mxu0 0
        %1383 = vmatpush2.bf16.msra.mxu0 0
        %1384 = vmatprep.subr.bf16.mxu0 0
        %1385 = vmatpush2.bf16.msra.mxu0 0
        %1386 = vmatprep.subr.bf16.mxu0 0
        %1387 = vmatpush2.bf16.msra.mxu0 0
        %1388 = vmatprep.subr.bf16.mxu0 0
        %1389 = vmatpush2.bf16.msra.mxu0 0
        %1390 = vmatprep.subr.bf16.mxu0 0
        %1391 = vmatpush2.bf16.msra.mxu0 0
        %1392 = vmatprep.mubr.bf16.mxu0 0
        %1393 = vmatmul.mubr.bf16.gmra.mxu0 %v1334
        %v1394 = vpop.f32.mrf.mxu0
        %v1395 = vadd.f32 %v1260, %v1394
        %v1396 = vpop.f32.mrf.mxu0
        %v1397 = vadd.f32 %v1262, %v1396
        %v1398 = vpop.f32.mrf.mxu0
        %v1399 = vadd.f32 %v1264, %v1398
        %v1400 = vpop.f32.mrf.mxu0
        %v1401 = vadd.f32 %v1266, %v1400
        %1402 = vmatprep.mubr.bf16.mxu0 0
        %1403 = vmatmul.mubr.bf16.gmra.mxu0 %v1337
        %v1404 = vpop.f32.mrf.mxu0
        %v1405 = vadd.f32 %v1270, %v1404
        %v1406 = vpop.f32.mrf.mxu0
        %v1407 = vadd.f32 %v1272, %v1406
        %v1408 = vpop.f32.mrf.mxu0
        %v1409 = vadd.f32 %v1274, %v1408
        %v1410 = vpop.f32.mrf.mxu0
        %v1411 = vadd.f32 %v1276, %v1410
        %1412 = vmatprep.mubr.bf16.mxu0 0
        %1413 = vmatmul.mubr.bf16.gmra.mxu0 %v1340
        %v1414 = vpop.f32.mrf.mxu0
        %v1415 = vadd.f32 %v1280, %v1414
        %v1416 = vpop.f32.mrf.mxu0
        %v1417 = vadd.f32 %v1282, %v1416
        %v1418 = vpop.f32.mrf.mxu0
        %v1419 = vadd.f32 %v1284, %v1418
        %v1420 = vpop.f32.mrf.mxu0
        %v1421 = vadd.f32 %v1286, %v1420
        %1422 = vmatprep.mubr.bf16.mxu0 0
        %1423 = vmatmul.mubr.bf16.gmra.mxu0 %v1343
        %v1424 = vpop.f32.mrf.mxu0
        %v1425 = vadd.f32 %v1290, %v1424
        %v1426 = vpop.f32.mrf.mxu0
        %v1427 = vadd.f32 %v1292, %v1426
        %v1428 = vpop.f32.mrf.mxu0
        %v1429 = vadd.f32 %v1294, %v1428
        %v1430 = vpop.f32.mrf.mxu0
        %v1431 = vadd.f32 %v1296, %v1430
        %1432 = vmatprep.mubr.bf16.mxu0 0
        %1433 = vmatmul.mubr.bf16.gmra.mxu0 %v1346
        %v1434 = vpop.f32.mrf.mxu0
        %v1435 = vadd.f32 %v1300, %v1434
        %v1436 = vpop.f32.mrf.mxu0
        %v1437 = vadd.f32 %v1302, %v1436
        %v1438 = vpop.f32.mrf.mxu0
        %v1439 = vadd.f32 %v1304, %v1438
        %v1440 = vpop.f32.mrf.mxu0
        %v1441 = vadd.f32 %v1306, %v1440
        %1442 = vmatprep.mubr.bf16.mxu0 0
        %1443 = vmatmul.mubr.bf16.gmra.mxu0 %v1349
        %v1444 = vpop.f32.mrf.mxu0
        %v1445 = vadd.f32 %v1310, %v1444
        %v1446 = vpop.f32.mrf.mxu0
        %v1447 = vadd.f32 %v1312, %v1446
        %v1448 = vpop.f32.mrf.mxu0
        %v1449 = vadd.f32 %v1314, %v1448
        %v1450 = vpop.f32.mrf.mxu0
        %v1451 = vadd.f32 %v1316, %v1450
        %1452 = vmatprep.mubr.bf16.mxu0 0
        %1453 = vmatmul.mubr.bf16.gmra.mxu0 %v1352
        %v1454 = vpop.f32.mrf.mxu0
        %v1455 = vadd.f32 %v1320, %v1454
        %v1456 = vpop.f32.mrf.mxu0
        %v1457 = vadd.f32 %v1322, %v1456
        %v1458 = vpop.f32.mrf.mxu0
        %v1459 = vadd.f32 %v1324, %v1458
        %v1460 = vpop.f32.mrf.mxu0
        %v1461 = vadd.f32 %v1326, %v1460
        %1462 = vdwg.mxu0
        %v1463 = vcombine.low %v230, %v229
        %v1464 = vcombine.low %v231, %v239
        %v1466 = vunpack.c.l.s4 1983009808
        %v1467 = vunpack.c.0.s8 %v1466
        %v1468 = vlaneseq
        %v1469 = vshrl.u32 %v1468, 7
        %v1470 = vsub.s32 %v1467, %v1469
        %v1471 = vrot.slane %v1463, %v1470
        %v1473 = vunpack.c.l.s4 1983009808
        %v1474 = vunpack.c.0.s8 %v1473
        %v1475 = vlaneseq
        %v1476 = vshrl.u32 %v1475, 7
        %v1477 = vsub.s32 %v1474, %v1476
        %v1478 = vrot.slane %v1464, %v1477
        %v1479 = vcombine.low %v1471, %v1478
        %v1480 = vcombine.low %v247, %v246
        %v1481 = vcombine.low %v739, %v263
        %v1483 = vunpack.c.l.s4 1983009808
        %v1484 = vunpack.c.0.s8 %v1483
        %v1485 = vlaneseq
        %v1486 = vshrl.u32 %v1485, 7
        %v1487 = vsub.s32 %v1484, %v1486
        %v1488 = vrot.slane %v1480, %v1487
        %v1490 = vunpack.c.l.s4 1983009808
        %v1491 = vunpack.c.0.s8 %v1490
        %v1492 = vlaneseq
        %v1493 = vshrl.u32 %v1492, 7
        %v1494 = vsub.s32 %v1491, %v1493
        %v1495 = vrot.slane %v1481, %v1494
        %v1496 = vcombine.low %v1488, %v1495
        %v1497 = vcombine.low %v262, %v264
        %v1498 = vcombine.low %v272, %v280
        %v1500 = vunpack.c.l.s4 1983009808
        %v1501 = vunpack.c.0.s8 %v1500
        %v1502 = vlaneseq
        %v1503 = vshrl.u32 %v1502, 7
        %v1504 = vsub.s32 %v1501, %v1503
        %v1505 = vrot.slane %v1497, %v1504
        %v1507 = vunpack.c.l.s4 1983009808
        %v1508 = vunpack.c.0.s8 %v1507
        %v1509 = vlaneseq
        %v1510 = vshrl.u32 %v1509, 7
        %v1511 = vsub.s32 %v1508, %v1510
        %v1512 = vrot.slane %v1498, %v1511
        %v1513 = vcombine.low %v1505, %v1512
        %v1514 = vcombine.low %v279, %v740
        %v1515 = vcombine.low %v296, %v295
        %v1517 = vunpack.c.l.s4 1983009808
        %v1518 = vunpack.c.0.s8 %v1517
        %v1519 = vlaneseq
        %v1520 = vshrl.u32 %v1519, 7
        %v1521 = vsub.s32 %v1518, %v1520
        %v1522 = vrot.slane %v1514, %v1521
        %v1524 = vunpack.c.l.s4 1983009808
        %v1525 = vunpack.c.0.s8 %v1524
        %v1526 = vlaneseq
        %v1527 = vshrl.u32 %v1526, 7
        %v1528 = vsub.s32 %v1525, %v1527
        %v1529 = vrot.slane %v1515, %v1528
        %v1530 = vcombine.low %v1522, %v1529
        %v1531 = vcombine.low %v297, %v305
        %v1532 = vcombine.low %v313, %v312
        %v1534 = vunpack.c.l.s4 1983009808
        %v1535 = vunpack.c.0.s8 %v1534
        %v1536 = vlaneseq
        %v1537 = vshrl.u32 %v1536, 7
        %v1538 = vsub.s32 %v1535, %v1537
        %v1539 = vrot.slane %v1531, %v1538
        %v1541 = vunpack.c.l.s4 1983009808
        %v1542 = vunpack.c.0.s8 %v1541
        %v1543 = vlaneseq
        %v1544 = vshrl.u32 %v1543, 7
        %v1545 = vsub.s32 %v1542, %v1544
        %v1546 = vrot.slane %v1532, %v1545
        %v1547 = vcombine.low %v1539, %v1546
        %v1548 = vcombine.low %v741, %v329
        %v1549 = vcombine.low %v328, %v330
        %v1551 = vunpack.c.l.s4 1983009808
        %v1552 = vunpack.c.0.s8 %v1551
        %v1553 = vlaneseq
        %v1554 = vshrl.u32 %v1553, 7
        %v1555 = vsub.s32 %v1552, %v1554
        %v1556 = vrot.slane %v1548, %v1555
        %v1558 = vunpack.c.l.s4 1983009808
        %v1559 = vunpack.c.0.s8 %v1558
        %v1560 = vlaneseq
        %v1561 = vshrl.u32 %v1560, 7
        %v1562 = vsub.s32 %v1559, %v1561
        %v1563 = vrot.slane %v1549, %v1562
        %v1564 = vcombine.low %v1556, %v1563
        %v1565 = vcombine.low %v338, %v346
        %v1566 = vcombine.low %v345, %v742
        %v1568 = vunpack.c.l.s4 1983009808
        %v1569 = vunpack.c.0.s8 %v1568
        %v1570 = vlaneseq
        %v1571 = vshrl.u32 %v1570, 7
        %v1572 = vsub.s32 %v1569, %v1571
        %v1573 = vrot.slane %v1565, %v1572
        %v1575 = vunpack.c.l.s4 1983009808
        %v1576 = vunpack.c.0.s8 %v1575
        %v1577 = vlaneseq
        %v1578 = vshrl.u32 %v1577, 7
        %v1579 = vsub.s32 %v1576, %v1578
        %v1580 = vrot.slane %v1566, %v1579
        %v1581 = vcombine.low %v1573, %v1580
        %v1582 = vcombine.low %v362, %v361
        %v1583 = vcombine.low %v363, %v371
        %v1585 = vunpack.c.l.s4 1983009808
        %v1586 = vunpack.c.0.s8 %v1585
        %v1587 = vlaneseq
        %v1588 = vshrl.u32 %v1587, 7
        %v1589 = vsub.s32 %v1586, %v1588
        %v1590 = vrot.slane %v1582, %v1589
        %v1592 = vunpack.c.l.s4 1983009808
        %v1593 = vunpack.c.0.s8 %v1592
        %v1594 = vlaneseq
        %v1595 = vshrl.u32 %v1594, 7
        %v1596 = vsub.s32 %v1593, %v1595
        %v1597 = vrot.slane %v1583, %v1596
        %v1598 = vcombine.low %v1590, %v1597
        %v1599 = vcombine.low %v379, %v378
        %v1600 = vcombine.low %v743, %v395
        %v1602 = vunpack.c.l.s4 1983009808
        %v1603 = vunpack.c.0.s8 %v1602
        %v1604 = vlaneseq
        %v1605 = vshrl.u32 %v1604, 7
        %v1606 = vsub.s32 %v1603, %v1605
        %v1607 = vrot.slane %v1599, %v1606
        %v1609 = vunpack.c.l.s4 1983009808
        %v1610 = vunpack.c.0.s8 %v1609
        %v1611 = vlaneseq
        %v1612 = vshrl.u32 %v1611, 7
        %v1613 = vsub.s32 %v1610, %v1612
        %v1614 = vrot.slane %v1600, %v1613
        %v1615 = vcombine.low %v1607, %v1614
        %v1616 = vcombine.low %v394, %v396
        %v1617 = vcombine.low %v404, %v412
        %v1619 = vunpack.c.l.s4 1983009808
        %v1620 = vunpack.c.0.s8 %v1619
        %v1621 = vlaneseq
        %v1622 = vshrl.u32 %v1621, 7
        %v1623 = vsub.s32 %v1620, %v1622
        %v1624 = vrot.slane %v1616, %v1623
        %v1626 = vunpack.c.l.s4 1983009808
        %v1627 = vunpack.c.0.s8 %v1626
        %v1628 = vlaneseq
        %v1629 = vshrl.u32 %v1628, 7
        %v1630 = vsub.s32 %v1627, %v1629
        %v1631 = vrot.slane %v1617, %v1630
        %v1632 = vcombine.low %v1624, %v1631
        %v1633 = vcombine.low %v411, %v744
        %v1634 = vcombine.low %v428, %v427
        %v1636 = vunpack.c.l.s4 1983009808
        %v1637 = vunpack.c.0.s8 %v1636
        %v1638 = vlaneseq
        %v1639 = vshrl.u32 %v1638, 7
        %v1640 = vsub.s32 %v1637, %v1639
        %v1641 = vrot.slane %v1633, %v1640
        %v1643 = vunpack.c.l.s4 1983009808
        %v1644 = vunpack.c.0.s8 %v1643
        %v1645 = vlaneseq
        %v1646 = vshrl.u32 %v1645, 7
        %v1647 = vsub.s32 %v1644, %v1646
        %v1648 = vrot.slane %v1634, %v1647
        %v1649 = vcombine.low %v1641, %v1648
        %v1650 = vcombine.low %v429, %v437
        %v1651 = vcombine.low %v445, %v444
        %v1653 = vunpack.c.l.s4 1983009808
        %v1654 = vunpack.c.0.s8 %v1653
        %v1655 = vlaneseq
        %v1656 = vshrl.u32 %v1655, 7
        %v1657 = vsub.s32 %v1654, %v1656
        %v1658 = vrot.slane %v1650, %v1657
        %v1660 = vunpack.c.l.s4 1983009808
        %v1661 = vunpack.c.0.s8 %v1660
        %v1662 = vlaneseq
        %v1663 = vshrl.u32 %v1662, 7
        %v1664 = vsub.s32 %v1661, %v1663
        %v1665 = vrot.slane %v1651, %v1664
        %v1666 = vcombine.low %v1658, %v1665
        %v1667 = vcombine.low %v745, %v461
        %v1668 = vcombine.low %v460, %v462
        %v1670 = vunpack.c.l.s4 1983009808
        %v1671 = vunpack.c.0.s8 %v1670
        %v1672 = vlaneseq
        %v1673 = vshrl.u32 %v1672, 7
        %v1674 = vsub.s32 %v1671, %v1673
        %v1675 = vrot.slane %v1667, %v1674
        %v1677 = vunpack.c.l.s4 1983009808
        %v1678 = vunpack.c.0.s8 %v1677
        %v1679 = vlaneseq
        %v1680 = vshrl.u32 %v1679, 7
        %v1681 = vsub.s32 %v1678, %v1680
        %v1682 = vrot.slane %v1668, %v1681
        %v1683 = vcombine.low %v1675, %v1682
        %v1684 = vcombine.low %v470, %v478
        %v1685 = vcombine.low %v477, %v746
        %v1687 = vunpack.c.l.s4 1983009808
        %v1688 = vunpack.c.0.s8 %v1687
        %v1689 = vlaneseq
        %v1690 = vshrl.u32 %v1689, 7
        %v1691 = vsub.s32 %v1688, %v1690
        %v1692 = vrot.slane %v1684, %v1691
        %v1694 = vunpack.c.l.s4 1983009808
        %v1695 = vunpack.c.0.s8 %v1694
        %v1696 = vlaneseq
        %v1697 = vshrl.u32 %v1696, 7
        %v1698 = vsub.s32 %v1695, %v1697
        %v1699 = vrot.slane %v1685, %v1698
        %v1700 = vcombine.low %v1692, %v1699
        %v1715 = vpack.c.bf16 %v1496, %v1479
        %v1716 = vpack.c.bf16 %v1530, %v1513
        %v1717 = vpack.c.bf16 %v1564, %v1547
        %v1718 = vpack.c.bf16 %v1598, %v1581
        %v1719 = vpack.c.bf16 %v1632, %v1615
        %v1720 = vpack.c.bf16 %v1666, %v1649
        %v1721 = vpack.c.bf16 %v1700, %v1683
        %s1722 = scalar_lea.vmem %s1, 16
        %v1723 = vld [vmem:[%s1722] sm:$0xff]
        %v1725 = vunpack.c.l.b16 %v1723
        %v1726 = vunpack.c.h.b16 %v1723
        %v1727 = vpack.c.b16 %v1725, %v1725
        %v1728 = vpack.c.b16 %v1726, %v1726
        %v1730 = vsel %vm1196, %v1715, 0
        %v1733 = vsel %vm1196, %v1716, 0
        %v1736 = vsel %vm1196, %v1717, 0
        %v1739 = vsel %vm1196, %v1718, 0
        %v1742 = vsel %vm1196, %v1719, 0
        %v1745 = vsel %vm1196, %v1720, 0
        %v1748 = vsel %vm1196, %v1721, 0
        %v1751 = vsel %vm1218, %v1727, 0
        %v1754 = vsel %vm1218, %v1728, 0
        %1756 = vmatprep.subr.bf16.mxu0 0
        %1757 = vmatpush1.bf16.msra.mxu0 0
        %1758 = vmatprep.subr.bf16.mxu0 0
        %1759 = vmatpush1.bf16.msra.mxu0 0
        %1760 = vmatprep.subr.bf16.mxu0 0
        %1761 = vmatpush1.bf16.msra.mxu0 0
        %1762 = vmatprep.subr.bf16.mxu0 0
        %1763 = vmatpush1.bf16.msra.mxu0 0
        %1764 = vmatprep.subr.bf16.mxu0 0
        %1765 = vmatpush1.bf16.msra.mxu0 0
        %1766 = vmatprep.subr.bf16.mxu0 0
        %1767 = vmatpush1.bf16.msra.mxu0 0
        %1768 = vmatprep.subr.bf16.mxu0 0
        %1769 = vmatpush1.bf16.msra.mxu0 0
        %1770 = vmatprep.subr.bf16.mxu0 %v1754
        %1771 = vmatpush1.bf16.msra.mxu0 %v1751
        %1772 = vmatprep.subr.bf16.mxu0 0
        %1773 = vmatpush2.bf16.msra.mxu0 0
        %1774 = vmatprep.subr.bf16.mxu0 0
        %1775 = vmatpush2.bf16.msra.mxu0 0
        %1776 = vmatprep.subr.bf16.mxu0 0
        %1777 = vmatpush2.bf16.msra.mxu0 0
        %1778 = vmatprep.subr.bf16.mxu0 0
        %1779 = vmatpush2.bf16.msra.mxu0 0
        %1780 = vmatprep.subr.bf16.mxu0 0
        %1781 = vmatpush2.bf16.msra.mxu0 0
        %1782 = vmatprep.subr.bf16.mxu0 0
        %1783 = vmatpush2.bf16.msra.mxu0 0
        %1784 = vmatprep.subr.bf16.mxu0 0
        %1785 = vmatpush2.bf16.msra.mxu0 0
        %1786 = vmatprep.subr.bf16.mxu0 0
        %1787 = vmatpush2.bf16.msra.mxu0 0
        %1788 = vmatprep.mubr.bf16.mxu0 0
        %1789 = vmatmul.mubr.bf16.gmra.mxu0 %v1730
        %v1790 = vpop.f32.mrf.mxu0
        %v1791 = vadd.f32 0.0, %v1790
        %v1792 = vpop.f32.mrf.mxu0
        %v1793 = vadd.f32 0.0, %v1792
        %v1794 = vpop.f32.mrf.mxu0
        %v1795 = vadd.f32 0.0, %v1794
        %v1796 = vpop.f32.mrf.mxu0
        %v1797 = vadd.f32 0.0, %v1796
        %1798 = vmatprep.mubr.bf16.mxu0 0
        %1799 = vmatmul.mubr.bf16.gmra.mxu0 %v1733
        %v1800 = vpop.f32.mrf.mxu0
        %v1801 = vadd.f32 0.0, %v1800
        %v1802 = vpop.f32.mrf.mxu0
        %v1803 = vadd.f32 0.0, %v1802
        %v1804 = vpop.f32.mrf.mxu0
        %v1805 = vadd.f32 0.0, %v1804
        %v1806 = vpop.f32.mrf.mxu0
        %v1807 = vadd.f32 0.0, %v1806
        %1808 = vmatprep.mubr.bf16.mxu0 0
        %1809 = vmatmul.mubr.bf16.gmra.mxu0 %v1736
        %v1810 = vpop.f32.mrf.mxu0
        %v1811 = vadd.f32 0.0, %v1810
        %v1812 = vpop.f32.mrf.mxu0
        %v1813 = vadd.f32 0.0, %v1812
        %v1814 = vpop.f32.mrf.mxu0
        %v1815 = vadd.f32 0.0, %v1814
        %v1816 = vpop.f32.mrf.mxu0
        %v1817 = vadd.f32 0.0, %v1816
        %1818 = vmatprep.mubr.bf16.mxu0 0
        %1819 = vmatmul.mubr.bf16.gmra.mxu0 %v1739
        %v1820 = vpop.f32.mrf.mxu0
        %v1821 = vadd.f32 0.0, %v1820
        %v1822 = vpop.f32.mrf.mxu0
        %v1823 = vadd.f32 0.0, %v1822
        %v1824 = vpop.f32.mrf.mxu0
        %v1825 = vadd.f32 0.0, %v1824
        %v1826 = vpop.f32.mrf.mxu0
        %v1827 = vadd.f32 0.0, %v1826
        %1828 = vmatprep.mubr.bf16.mxu0 0
        %1829 = vmatmul.mubr.bf16.gmra.mxu0 %v1742
        %v1830 = vpop.f32.mrf.mxu0
        %v1831 = vadd.f32 0.0, %v1830
        %v1832 = vpop.f32.mrf.mxu0
        %v1833 = vadd.f32 0.0, %v1832
        %v1834 = vpop.f32.mrf.mxu0
        %v1835 = vadd.f32 0.0, %v1834
        %v1836 = vpop.f32.mrf.mxu0
        %v1837 = vadd.f32 0.0, %v1836
        %1838 = vmatprep.mubr.bf16.mxu0 0
        %1839 = vmatmul.mubr.bf16.gmra.mxu0 %v1745
        %v1840 = vpop.f32.mrf.mxu0
        %v1841 = vadd.f32 0.0, %v1840
        %v1842 = vpop.f32.mrf.mxu0
        %v1843 = vadd.f32 0.0, %v1842
        %v1844 = vpop.f32.mrf.mxu0
        %v1845 = vadd.f32 0.0, %v1844
        %v1846 = vpop.f32.mrf.mxu0
        %v1847 = vadd.f32 0.0, %v1846
        %1848 = vmatprep.mubr.bf16.mxu0 0
        %1849 = vmatmul.mubr.bf16.gmra.mxu0 %v1748
        %v1850 = vpop.f32.mrf.mxu0
        %v1851 = vadd.f32 0.0, %v1850
        %v1852 = vpop.f32.mrf.mxu0
        %v1853 = vadd.f32 0.0, %v1852
        %v1854 = vpop.f32.mrf.mxu0
        %v1855 = vadd.f32 0.0, %v1854
        %v1856 = vpop.f32.mrf.mxu0
        %v1857 = vadd.f32 0.0, %v1856
        %1858 = vdwg.mxu0
        %v1859 = vadd.f32 %v1395, %v1791
        %v1860 = vadd.f32 %v1397, %v1793
        %v1861 = vadd.f32 %v1399, %v1795
        %v1862 = vadd.f32 %v1401, %v1797
        %v1863 = vadd.f32 %v1405, %v1801
        %v1864 = vadd.f32 %v1407, %v1803
        %v1865 = vadd.f32 %v1409, %v1805
        %v1866 = vadd.f32 %v1411, %v1807
        %v1867 = vadd.f32 %v1415, %v1811
        %v1868 = vadd.f32 %v1417, %v1813
        %v1869 = vadd.f32 %v1419, %v1815
        %v1870 = vadd.f32 %v1421, %v1817
        %v1871 = vadd.f32 %v1425, %v1821
        %v1872 = vadd.f32 %v1427, %v1823
        %v1873 = vadd.f32 %v1429, %v1825
        %v1874 = vadd.f32 %v1431, %v1827
        %v1875 = vadd.f32 %v1435, %v1831
        %v1876 = vadd.f32 %v1437, %v1833
        %v1877 = vadd.f32 %v1439, %v1835
        %v1878 = vadd.f32 %v1441, %v1837
        %v1879 = vadd.f32 %v1445, %v1841
        %v1880 = vadd.f32 %v1447, %v1843
        %v1881 = vadd.f32 %v1449, %v1845
        %v1882 = vadd.f32 %v1451, %v1847
        %v1883 = vadd.f32 %v1455, %v1851
        %v1884 = vadd.f32 %v1457, %v1853
        %v1885 = vadd.f32 %v1459, %v1855
        %v1886 = vadd.f32 %v1461, %v1857
        %v1896 = vunpack.c.l.s4 1983009808
        %v1897 = vunpack.c.0.s8 %v1896
        %v1898 = vlaneseq
        %v1899 = vshrl.u32 %v1898, 7
        %v1900 = vsub.s32 %v1897, %v1899
        %v1901 = vrot.slane %v177, %v1900
        %v1903 = vunpack.c.l.s4 1983009808
        %v1904 = vunpack.c.0.s8 %v1903
        %v1905 = vlaneseq
        %v1906 = vshrl.u32 %v1905, 7
        %v1907 = vsub.s32 %v1904, %v1906
        %v1908 = vrot.slane %v180, %v1907
        %v1910 = vunpack.c.l.s4 1983009808
        %v1911 = vunpack.c.0.s8 %v1910
        %v1912 = vlaneseq
        %v1913 = vshrl.u32 %v1912, 7
        %v1914 = vsub.s32 %v1911, %v1913
        %v1915 = vrot.slane %v183, %v1914
        %v1917 = vunpack.c.l.s4 1983009808
        %v1918 = vunpack.c.0.s8 %v1917
        %v1919 = vlaneseq
        %v1920 = vshrl.u32 %v1919, 7
        %v1921 = vsub.s32 %v1918, %v1920
        %v1922 = vrot.slane %v186, %v1921
        %v1924 = vunpack.c.l.s4 1983009808
        %v1925 = vunpack.c.0.s8 %v1924
        %v1926 = vlaneseq
        %v1927 = vshrl.u32 %v1926, 7
        %v1928 = vsub.s32 %v1925, %v1927
        %v1929 = vrot.slane %v189, %v1928
        %v1931 = vunpack.c.l.s4 1983009808
        %v1932 = vunpack.c.0.s8 %v1931
        %v1933 = vlaneseq
        %v1934 = vshrl.u32 %v1933, 7
        %v1935 = vsub.s32 %v1932, %v1934
        %v1936 = vrot.slane %v192, %v1935
        %v1938 = vunpack.c.l.s4 1983009808
        %v1939 = vunpack.c.0.s8 %v1938
        %v1940 = vlaneseq
        %v1941 = vshrl.u32 %v1940, 7
        %v1942 = vsub.s32 %v1939, %v1941
        %v1943 = vrot.slane %v195, %v1942
        %v1945 = vunpack.c.l.s4 1983009808
        %v1946 = vunpack.c.0.s8 %v1945
        %v1947 = vlaneseq
        %v1948 = vshrl.u32 %v1947, 7
        %v1949 = vsub.s32 %v1946, %v1948
        %v1950 = vrot.slane %v198, %v1949
        %v1951 = vrot.slane %v774, 2
        %v1952 = vrot.slane %v1901, 7
        %v1953 = vsel %vm753, %v1951, %v1952
        %v1954 = vrot.slane %v796, 2
        %v1955 = vrot.slane %v1908, 7
        %v1956 = vsel %vm753, %v1954, %v1955
        %v1957 = vrot.slane %v818, 2
        %v1958 = vrot.slane %v1915, 7
        %v1959 = vsel %vm753, %v1957, %v1958
        %v1960 = vrot.slane %v840, 2
        %v1961 = vrot.slane %v1922, 7
        %v1962 = vsel %vm753, %v1960, %v1961
        %v1963 = vrot.slane %v862, 2
        %v1964 = vrot.slane %v1929, 7
        %v1965 = vsel %vm753, %v1963, %v1964
        %v1966 = vrot.slane %v884, 2
        %v1967 = vrot.slane %v1936, 7
        %v1968 = vsel %vm753, %v1966, %v1967
        %v1969 = vrot.slane %v906, 2
        %v1970 = vrot.slane %v1943, 7
        %v1971 = vsel %vm753, %v1969, %v1970
        %v1972 = vrot.slane %v928, 2
        %v1973 = vrot.slane %v1950, 7
        %v1974 = vsel %vm753, %v1972, %v1973
        %v1975 = vcombine.low %v760, %v763
        %v1976 = vcombine.low %v766, %v769
        %v1978 = vunpack.c.l.s4 1983009808
        %v1979 = vunpack.c.0.s8 %v1978
        %v1980 = vlaneseq
        %v1981 = vshrl.u32 %v1980, 7
        %v1982 = vsub.s32 %v1979, %v1981
        %v1983 = vrot.slane %v1975, %v1982
        %v1985 = vunpack.c.l.s4 1983009808
        %v1986 = vunpack.c.0.s8 %v1985
        %v1987 = vlaneseq
        %v1988 = vshrl.u32 %v1987, 7
        %v1989 = vsub.s32 %v1986, %v1988
        %v1990 = vrot.slane %v1976, %v1989
        %v1991 = vcombine.low %v1983, %v1990
        %v1992 = vcombine.low %v772, %v775
        %v1993 = vcombine.low %v1953, %v782
        %v1995 = vunpack.c.l.s4 1983009808
        %v1996 = vunpack.c.0.s8 %v1995
        %v1997 = vlaneseq
        %v1998 = vshrl.u32 %v1997, 7
        %v1999 = vsub.s32 %v1996, %v1998
        %v2000 = vrot.slane %v1992, %v1999
        %v2002 = vunpack.c.l.s4 1983009808
        %v2003 = vunpack.c.0.s8 %v2002
        %v2004 = vlaneseq
        %v2005 = vshrl.u32 %v2004, 7
        %v2006 = vsub.s32 %v2003, %v2005
        %v2007 = vrot.slane %v1993, %v2006
        %v2008 = vcombine.low %v2000, %v2007
        %v2009 = vcombine.low %v785, %v788
        %v2010 = vcombine.low %v791, %v794
        %v2012 = vunpack.c.l.s4 1983009808
        %v2013 = vunpack.c.0.s8 %v2012
        %v2014 = vlaneseq
        %v2015 = vshrl.u32 %v2014, 7
        %v2016 = vsub.s32 %v2013, %v2015
        %v2017 = vrot.slane %v2009, %v2016
        %v2019 = vunpack.c.l.s4 1983009808
        %v2020 = vunpack.c.0.s8 %v2019
        %v2021 = vlaneseq
        %v2022 = vshrl.u32 %v2021, 7
        %v2023 = vsub.s32 %v2020, %v2022
        %v2024 = vrot.slane %v2010, %v2023
        %v2025 = vcombine.low %v2017, %v2024
        %v2026 = vcombine.low %v797, %v1956
        %v2027 = vcombine.low %v804, %v807
        %v2029 = vunpack.c.l.s4 1983009808
        %v2030 = vunpack.c.0.s8 %v2029
        %v2031 = vlaneseq
        %v2032 = vshrl.u32 %v2031, 7
        %v2033 = vsub.s32 %v2030, %v2032
        %v2034 = vrot.slane %v2026, %v2033
        %v2036 = vunpack.c.l.s4 1983009808
        %v2037 = vunpack.c.0.s8 %v2036
        %v2038 = vlaneseq
        %v2039 = vshrl.u32 %v2038, 7
        %v2040 = vsub.s32 %v2037, %v2039
        %v2041 = vrot.slane %v2027, %v2040
        %v2042 = vcombine.low %v2034, %v2041
        %v2043 = vcombine.low %v810, %v813
        %v2044 = vcombine.low %v816, %v819
        %v2046 = vunpack.c.l.s4 1983009808
        %v2047 = vunpack.c.0.s8 %v2046
        %v2048 = vlaneseq
        %v2049 = vshrl.u32 %v2048, 7
        %v2050 = vsub.s32 %v2047, %v2049
        %v2051 = vrot.slane %v2043, %v2050
        %v2053 = vunpack.c.l.s4 1983009808
        %v2054 = vunpack.c.0.s8 %v2053
        %v2055 = vlaneseq
        %v2056 = vshrl.u32 %v2055, 7
        %v2057 = vsub.s32 %v2054, %v2056
        %v2058 = vrot.slane %v2044, %v2057
        %v2059 = vcombine.low %v2051, %v2058
        %v2060 = vcombine.low %v1959, %v826
        %v2061 = vcombine.low %v829, %v832
        %v2063 = vunpack.c.l.s4 1983009808
        %v2064 = vunpack.c.0.s8 %v2063
        %v2065 = vlaneseq
        %v2066 = vshrl.u32 %v2065, 7
        %v2067 = vsub.s32 %v2064, %v2066
        %v2068 = vrot.slane %v2060, %v2067
        %v2070 = vunpack.c.l.s4 1983009808
        %v2071 = vunpack.c.0.s8 %v2070
        %v2072 = vlaneseq
        %v2073 = vshrl.u32 %v2072, 7
        %v2074 = vsub.s32 %v2071, %v2073
        %v2075 = vrot.slane %v2061, %v2074
        %v2076 = vcombine.low %v2068, %v2075
        %v2077 = vcombine.low %v835, %v838
        %v2078 = vcombine.low %v841, %v1962
        %v2080 = vunpack.c.l.s4 1983009808
        %v2081 = vunpack.c.0.s8 %v2080
        %v2082 = vlaneseq
        %v2083 = vshrl.u32 %v2082, 7
        %v2084 = vsub.s32 %v2081, %v2083
        %v2085 = vrot.slane %v2077, %v2084
        %v2087 = vunpack.c.l.s4 1983009808
        %v2088 = vunpack.c.0.s8 %v2087
        %v2089 = vlaneseq
        %v2090 = vshrl.u32 %v2089, 7
        %v2091 = vsub.s32 %v2088, %v2090
        %v2092 = vrot.slane %v2078, %v2091
        %v2093 = vcombine.low %v2085, %v2092
        %v2094 = vcombine.low %v848, %v851
        %v2095 = vcombine.low %v854, %v857
        %v2097 = vunpack.c.l.s4 1983009808
        %v2098 = vunpack.c.0.s8 %v2097
        %v2099 = vlaneseq
        %v2100 = vshrl.u32 %v2099, 7
        %v2101 = vsub.s32 %v2098, %v2100
        %v2102 = vrot.slane %v2094, %v2101
        %v2104 = vunpack.c.l.s4 1983009808
        %v2105 = vunpack.c.0.s8 %v2104
        %v2106 = vlaneseq
        %v2107 = vshrl.u32 %v2106, 7
        %v2108 = vsub.s32 %v2105, %v2107
        %v2109 = vrot.slane %v2095, %v2108
        %v2110 = vcombine.low %v2102, %v2109
        %v2111 = vcombine.low %v860, %v863
        %v2112 = vcombine.low %v1965, %v870
        %v2114 = vunpack.c.l.s4 1983009808
        %v2115 = vunpack.c.0.s8 %v2114
        %v2116 = vlaneseq
        %v2117 = vshrl.u32 %v2116, 7
        %v2118 = vsub.s32 %v2115, %v2117
        %v2119 = vrot.slane %v2111, %v2118
        %v2121 = vunpack.c.l.s4 1983009808
        %v2122 = vunpack.c.0.s8 %v2121
        %v2123 = vlaneseq
        %v2124 = vshrl.u32 %v2123, 7
        %v2125 = vsub.s32 %v2122, %v2124
        %v2126 = vrot.slane %v2112, %v2125
        %v2127 = vcombine.low %v2119, %v2126
        %v2128 = vcombine.low %v873, %v876
        %v2129 = vcombine.low %v879, %v882
        %v2131 = vunpack.c.l.s4 1983009808
        %v2132 = vunpack.c.0.s8 %v2131
        %v2133 = vlaneseq
        %v2134 = vshrl.u32 %v2133, 7
        %v2135 = vsub.s32 %v2132, %v2134
        %v2136 = vrot.slane %v2128, %v2135
        %v2138 = vunpack.c.l.s4 1983009808
        %v2139 = vunpack.c.0.s8 %v2138
        %v2140 = vlaneseq
        %v2141 = vshrl.u32 %v2140, 7
        %v2142 = vsub.s32 %v2139, %v2141
        %v2143 = vrot.slane %v2129, %v2142
        %v2144 = vcombine.low %v2136, %v2143
        %v2145 = vcombine.low %v885, %v1968
        %v2146 = vcombine.low %v892, %v895
        %v2148 = vunpack.c.l.s4 1983009808
        %v2149 = vunpack.c.0.s8 %v2148
        %v2150 = vlaneseq
        %v2151 = vshrl.u32 %v2150, 7
        %v2152 = vsub.s32 %v2149, %v2151
        %v2153 = vrot.slane %v2145, %v2152
        %v2155 = vunpack.c.l.s4 1983009808
        %v2156 = vunpack.c.0.s8 %v2155
        %v2157 = vlaneseq
        %v2158 = vshrl.u32 %v2157, 7
        %v2159 = vsub.s32 %v2156, %v2158
        %v2160 = vrot.slane %v2146, %v2159
        %v2161 = vcombine.low %v2153, %v2160
        %v2162 = vcombine.low %v898, %v901
        %v2163 = vcombine.low %v904, %v907
        %v2165 = vunpack.c.l.s4 1983009808
        %v2166 = vunpack.c.0.s8 %v2165
        %v2167 = vlaneseq
        %v2168 = vshrl.u32 %v2167, 7
        %v2169 = vsub.s32 %v2166, %v2168
        %v2170 = vrot.slane %v2162, %v2169
        %v2172 = vunpack.c.l.s4 1983009808
        %v2173 = vunpack.c.0.s8 %v2172
        %v2174 = vlaneseq
        %v2175 = vshrl.u32 %v2174, 7
        %v2176 = vsub.s32 %v2173, %v2175
        %v2177 = vrot.slane %v2163, %v2176
        %v2178 = vcombine.low %v2170, %v2177
        %v2179 = vcombine.low %v1971, %v914
        %v2180 = vcombine.low %v917, %v920
        %v2182 = vunpack.c.l.s4 1983009808
        %v2183 = vunpack.c.0.s8 %v2182
        %v2184 = vlaneseq
        %v2185 = vshrl.u32 %v2184, 7
        %v2186 = vsub.s32 %v2183, %v2185
        %v2187 = vrot.slane %v2179, %v2186
        %v2189 = vunpack.c.l.s4 1983009808
        %v2190 = vunpack.c.0.s8 %v2189
        %v2191 = vlaneseq
        %v2192 = vshrl.u32 %v2191, 7
        %v2193 = vsub.s32 %v2190, %v2192
        %v2194 = vrot.slane %v2180, %v2193
        %v2195 = vcombine.low %v2187, %v2194
        %v2196 = vcombine.low %v923, %v926
        %v2197 = vcombine.low %v929, %v1974
        %v2199 = vunpack.c.l.s4 1983009808
        %v2200 = vunpack.c.0.s8 %v2199
        %v2201 = vlaneseq
        %v2202 = vshrl.u32 %v2201, 7
        %v2203 = vsub.s32 %v2200, %v2202
        %v2204 = vrot.slane %v2196, %v2203
        %v2206 = vunpack.c.l.s4 1983009808
        %v2207 = vunpack.c.0.s8 %v2206
        %v2208 = vlaneseq
        %v2209 = vshrl.u32 %v2208, 7
        %v2210 = vsub.s32 %v2207, %v2209
        %v2211 = vrot.slane %v2197, %v2210
        %v2212 = vcombine.low %v2204, %v2211
        %v2227 = vpack.c.bf16 %v2008, %v1991
        %v2228 = vpack.c.bf16 %v2042, %v2025
        %v2229 = vpack.c.bf16 %v2076, %v2059
        %v2230 = vpack.c.bf16 %v2110, %v2093
        %v2231 = vpack.c.bf16 %v2144, %v2127
        %v2232 = vpack.c.bf16 %v2178, %v2161
        %v2233 = vpack.c.bf16 %v2212, %v2195
        %s2234 = scalar_lea.vmem %s1, 24
        %v2235 = vld [vmem:[%s2234] sm:$0xff]
        %v2237 = vunpack.c.l.b16 %v2235
        %v2238 = vunpack.c.h.b16 %v2235
        %v2239 = vpack.c.b16 %v2237, %v2237
        %v2240 = vpack.c.b16 %v2238, %v2238
        %v2242 = vsel %vm1196, %v2227, 0
        %v2245 = vsel %vm1196, %v2228, 0
        %v2248 = vsel %vm1196, %v2229, 0
        %v2251 = vsel %vm1196, %v2230, 0
        %v2254 = vsel %vm1196, %v2231, 0
        %v2257 = vsel %vm1196, %v2232, 0
        %v2260 = vsel %vm1196, %v2233, 0
        %v2263 = vsel %vm1218, %v2239, 0
        %v2266 = vsel %vm1218, %v2240, 0
        %2268 = vmatprep.subr.bf16.mxu0 0
        %2269 = vmatpush1.bf16.msra.mxu0 0
        %2270 = vmatprep.subr.bf16.mxu0 0
        %2271 = vmatpush1.bf16.msra.mxu0 0
        %2272 = vmatprep.subr.bf16.mxu0 0
        %2273 = vmatpush1.bf16.msra.mxu0 0
        %2274 = vmatprep.subr.bf16.mxu0 0
        %2275 = vmatpush1.bf16.msra.mxu0 0
        %2276 = vmatprep.subr.bf16.mxu0 0
        %2277 = vmatpush1.bf16.msra.mxu0 0
        %2278 = vmatprep.subr.bf16.mxu0 0
        %2279 = vmatpush1.bf16.msra.mxu0 0
        %2280 = vmatprep.subr.bf16.mxu0 0
        %2281 = vmatpush1.bf16.msra.mxu0 0
        %2282 = vmatprep.subr.bf16.mxu0 %v2266
        %2283 = vmatpush1.bf16.msra.mxu0 %v2263
        %2284 = vmatprep.subr.bf16.mxu0 0
        %2285 = vmatpush2.bf16.msra.mxu0 0
        %2286 = vmatprep.subr.bf16.mxu0 0
        %2287 = vmatpush2.bf16.msra.mxu0 0
        %2288 = vmatprep.subr.bf16.mxu0 0
        %2289 = vmatpush2.bf16.msra.mxu0 0
        %2290 = vmatprep.subr.bf16.mxu0 0
        %2291 = vmatpush2.bf16.msra.mxu0 0
        %2292 = vmatprep.subr.bf16.mxu0 0
        %2293 = vmatpush2.bf16.msra.mxu0 0
        %2294 = vmatprep.subr.bf16.mxu0 0
        %2295 = vmatpush2.bf16.msra.mxu0 0
        %2296 = vmatprep.subr.bf16.mxu0 0
        %2297 = vmatpush2.bf16.msra.mxu0 0
        %2298 = vmatprep.subr.bf16.mxu0 0
        %2299 = vmatpush2.bf16.msra.mxu0 0
        %2300 = vmatprep.mubr.bf16.mxu0 0
        %2301 = vmatmul.mubr.bf16.gmra.mxu0 %v2242
        %v2302 = vpop.f32.mrf.mxu0
        %v2303 = vadd.f32 0.0, %v2302
        %v2304 = vpop.f32.mrf.mxu0
        %v2305 = vadd.f32 0.0, %v2304
        %v2306 = vpop.f32.mrf.mxu0
        %v2307 = vadd.f32 0.0, %v2306
        %v2308 = vpop.f32.mrf.mxu0
        %v2309 = vadd.f32 0.0, %v2308
        %2310 = vmatprep.mubr.bf16.mxu0 0
        %2311 = vmatmul.mubr.bf16.gmra.mxu0 %v2245
        %v2312 = vpop.f32.mrf.mxu0
        %v2313 = vadd.f32 0.0, %v2312
        %v2314 = vpop.f32.mrf.mxu0
        %v2315 = vadd.f32 0.0, %v2314
        %v2316 = vpop.f32.mrf.mxu0
        %v2317 = vadd.f32 0.0, %v2316
        %v2318 = vpop.f32.mrf.mxu0
        %v2319 = vadd.f32 0.0, %v2318
        %2320 = vmatprep.mubr.bf16.mxu0 0
        %2321 = vmatmul.mubr.bf16.gmra.mxu0 %v2248
        %v2322 = vpop.f32.mrf.mxu0
        %v2323 = vadd.f32 0.0, %v2322
        %v2324 = vpop.f32.mrf.mxu0
        %v2325 = vadd.f32 0.0, %v2324
        %v2326 = vpop.f32.mrf.mxu0
        %v2327 = vadd.f32 0.0, %v2326
        %v2328 = vpop.f32.mrf.mxu0
        %v2329 = vadd.f32 0.0, %v2328
        %2330 = vmatprep.mubr.bf16.mxu0 0
        %2331 = vmatmul.mubr.bf16.gmra.mxu0 %v2251
        %v2332 = vpop.f32.mrf.mxu0
        %v2333 = vadd.f32 0.0, %v2332
        %v2334 = vpop.f32.mrf.mxu0
        %v2335 = vadd.f32 0.0, %v2334
        %v2336 = vpop.f32.mrf.mxu0
        %v2337 = vadd.f32 0.0, %v2336
        %v2338 = vpop.f32.mrf.mxu0
        %v2339 = vadd.f32 0.0, %v2338
        %2340 = vmatprep.mubr.bf16.mxu0 0
        %2341 = vmatmul.mubr.bf16.gmra.mxu0 %v2254
        %v2342 = vpop.f32.mrf.mxu0
        %v2343 = vadd.f32 0.0, %v2342
        %v2344 = vpop.f32.mrf.mxu0
        %v2345 = vadd.f32 0.0, %v2344
        %v2346 = vpop.f32.mrf.mxu0
        %v2347 = vadd.f32 0.0, %v2346
        %v2348 = vpop.f32.mrf.mxu0
        %v2349 = vadd.f32 0.0, %v2348
        %2350 = vmatprep.mubr.bf16.mxu0 0
        %2351 = vmatmul.mubr.bf16.gmra.mxu0 %v2257
        %v2352 = vpop.f32.mrf.mxu0
        %v2353 = vadd.f32 0.0, %v2352
        %v2354 = vpop.f32.mrf.mxu0
        %v2355 = vadd.f32 0.0, %v2354
        %v2356 = vpop.f32.mrf.mxu0
        %v2357 = vadd.f32 0.0, %v2356
        %v2358 = vpop.f32.mrf.mxu0
        %v2359 = vadd.f32 0.0, %v2358
        %2360 = vmatprep.mubr.bf16.mxu0 0
        %2361 = vmatmul.mubr.bf16.gmra.mxu0 %v2260
        %v2362 = vpop.f32.mrf.mxu0
        %v2363 = vadd.f32 0.0, %v2362
        %v2364 = vpop.f32.mrf.mxu0
        %v2365 = vadd.f32 0.0, %v2364
        %v2366 = vpop.f32.mrf.mxu0
        %v2367 = vadd.f32 0.0, %v2366
        %v2368 = vpop.f32.mrf.mxu0
        %v2369 = vadd.f32 0.0, %v2368
        %2370 = vdwg.mxu0
        %v2371 = vadd.f32 %v1859, %v2303
        %v2372 = vadd.f32 %v1860, %v2305
        %v2373 = vadd.f32 %v1861, %v2307
        %v2374 = vadd.f32 %v1862, %v2309
        %v2375 = vadd.f32 %v1863, %v2313
        %v2376 = vadd.f32 %v1864, %v2315
        %v2377 = vadd.f32 %v1865, %v2317
        %v2378 = vadd.f32 %v1866, %v2319
        %v2379 = vadd.f32 %v1867, %v2323
        %v2380 = vadd.f32 %v1868, %v2325
        %v2381 = vadd.f32 %v1869, %v2327
        %v2382 = vadd.f32 %v1870, %v2329
        %v2383 = vadd.f32 %v1871, %v2333
        %v2384 = vadd.f32 %v1872, %v2335
        %v2385 = vadd.f32 %v1873, %v2337
        %v2386 = vadd.f32 %v1874, %v2339
        %v2387 = vadd.f32 %v1875, %v2343
        %v2388 = vadd.f32 %v1876, %v2345
        %v2389 = vadd.f32 %v1877, %v2347
        %v2390 = vadd.f32 %v1878, %v2349
        %v2391 = vadd.f32 %v1879, %v2353
        %v2392 = vadd.f32 %v1880, %v2355
        %v2393 = vadd.f32 %v1881, %v2357
        %v2394 = vadd.f32 %v1882, %v2359
        %v2395 = vadd.f32 %v1883, %v2363
        %v2396 = vadd.f32 %v1884, %v2365
        %v2397 = vadd.f32 %v1885, %v2367
        %v2398 = vadd.f32 %v1886, %v2369
        %v2399 = vcombine.low %v494, %v504
        %v2400 = vcombine.low %v246, %v739
        %v2401 = vcombine.low %v1901, %v262
        %v2403 = vunpack.c.l.s4 1983009808
        %v2404 = vunpack.c.0.s8 %v2403
        %v2405 = vlaneseq
        %v2406 = vshrl.u32 %v2405, 7
        %v2407 = vsub.s32 %v2404, %v2406
        %v2408 = vrot.slane %v2400, %v2407
        %v2410 = vunpack.c.l.s4 1983009808
        %v2411 = vunpack.c.0.s8 %v2410
        %v2412 = vlaneseq
        %v2413 = vshrl.u32 %v2412, 7
        %v2414 = vsub.s32 %v2411, %v2413
        %v2415 = vrot.slane %v2401, %v2414
        %v2416 = vcombine.low %v2408, %v2415
        %v2417 = vcombine.low %v528, %v538
        %v2418 = vcombine.low %v740, %v1908
        %v2420 = vunpack.c.l.s4 1983009808
        %v2421 = vunpack.c.0.s8 %v2420
        %v2422 = vlaneseq
        %v2423 = vshrl.u32 %v2422, 7
        %v2424 = vsub.s32 %v2421, %v2423
        %v2425 = vrot.slane %v2418, %v2424
        %v2426 = vcombine.low %v2425, %v555
        %v2427 = vcombine.low %v312, %v741
        %v2429 = vunpack.c.l.s4 1983009808
        %v2430 = vunpack.c.0.s8 %v2429
        %v2431 = vlaneseq
        %v2432 = vshrl.u32 %v2431, 7
        %v2433 = vsub.s32 %v2430, %v2432
        %v2434 = vrot.slane %v2427, %v2433
        %v2435 = vcombine.low %v562, %v2434
        %v2436 = vcombine.low %v1915, %v328
        %v2438 = vunpack.c.l.s4 1983009808
        %v2439 = vunpack.c.0.s8 %v2438
        %v2440 = vlaneseq
        %v2441 = vshrl.u32 %v2440, 7
        %v2442 = vsub.s32 %v2439, %v2441
        %v2443 = vrot.slane %v2436, %v2442
        %v2444 = vcombine.low %v2443, %v589
        %v2445 = vcombine.low %v742, %v1922
        %v2447 = vunpack.c.l.s4 1983009808
        %v2448 = vunpack.c.0.s8 %v2447
        %v2449 = vlaneseq
        %v2450 = vshrl.u32 %v2449, 7
        %v2451 = vsub.s32 %v2448, %v2450
        %v2452 = vrot.slane %v2445, %v2451
        %v2453 = vcombine.low %v596, %v2452
        %v2454 = vcombine.low %v613, %v623
        %v2455 = vcombine.low %v378, %v743
        %v2456 = vcombine.low %v1929, %v394
        %v2458 = vunpack.c.l.s4 1983009808
        %v2459 = vunpack.c.0.s8 %v2458
        %v2460 = vlaneseq
        %v2461 = vshrl.u32 %v2460, 7
        %v2462 = vsub.s32 %v2459, %v2461
        %v2463 = vrot.slane %v2455, %v2462
        %v2465 = vunpack.c.l.s4 1983009808
        %v2466 = vunpack.c.0.s8 %v2465
        %v2467 = vlaneseq
        %v2468 = vshrl.u32 %v2467, 7
        %v2469 = vsub.s32 %v2466, %v2468
        %v2470 = vrot.slane %v2456, %v2469
        %v2471 = vcombine.low %v2463, %v2470
        %v2472 = vcombine.low %v647, %v657
        %v2473 = vcombine.low %v744, %v1936
        %v2475 = vunpack.c.l.s4 1983009808
        %v2476 = vunpack.c.0.s8 %v2475
        %v2477 = vlaneseq
        %v2478 = vshrl.u32 %v2477, 7
        %v2479 = vsub.s32 %v2476, %v2478
        %v2480 = vrot.slane %v2473, %v2479
        %v2481 = vcombine.low %v2480, %v674
        %v2482 = vcombine.low %v444, %v745
        %v2484 = vunpack.c.l.s4 1983009808
        %v2485 = vunpack.c.0.s8 %v2484
        %v2486 = vlaneseq
        %v2487 = vshrl.u32 %v2486, 7
        %v2488 = vsub.s32 %v2485, %v2487
        %v2489 = vrot.slane %v2482, %v2488
        %v2490 = vcombine.low %v681, %v2489
        %v2491 = vcombine.low %v1943, %v460
        %v2493 = vunpack.c.l.s4 1983009808
        %v2494 = vunpack.c.0.s8 %v2493
        %v2495 = vlaneseq
        %v2496 = vshrl.u32 %v2495, 7
        %v2497 = vsub.s32 %v2494, %v2496
        %v2498 = vrot.slane %v2491, %v2497
        %v2499 = vcombine.low %v2498, %v708
        %v2500 = vcombine.low %v746, %v1950
        %v2502 = vunpack.c.l.s4 1983009808
        %v2503 = vunpack.c.0.s8 %v2502
        %v2504 = vlaneseq
        %v2505 = vshrl.u32 %v2504, 7
        %v2506 = vsub.s32 %v2503, %v2505
        %v2507 = vrot.slane %v2500, %v2506
        %v2508 = vcombine.low %v715, %v2507
        %v2523 = vpack.c.bf16 %v2416, %v2399
        %v2524 = vpack.c.bf16 %v2426, %v2417
        %v2525 = vpack.c.bf16 %v2444, %v2435
        %v2526 = vpack.c.bf16 %v2454, %v2453
        %v2527 = vpack.c.bf16 %v2472, %v2471
        %v2528 = vpack.c.bf16 %v2490, %v2481
        %v2529 = vpack.c.bf16 %v2508, %v2499
        %s2530 = scalar_lea.vmem %s1, 32
        %v2531 = vld [vmem:[%s2530] sm:$0xff]
        %v2533 = vunpack.c.l.b16 %v2531
        %v2534 = vunpack.c.h.b16 %v2531
        %v2535 = vpack.c.b16 %v2533, %v2533
        %v2536 = vpack.c.b16 %v2534, %v2534
        %v2538 = vsel %vm1196, %v2523, 0
        %v2541 = vsel %vm1196, %v2524, 0
        %v2544 = vsel %vm1196, %v2525, 0
        %v2547 = vsel %vm1196, %v2526, 0
        %v2550 = vsel %vm1196, %v2527, 0
        %v2553 = vsel %vm1196, %v2528, 0
        %v2556 = vsel %vm1196, %v2529, 0
        %v2559 = vsel %vm1218, %v2535, 0
        %v2562 = vsel %vm1218, %v2536, 0
        %2564 = vmatprep.subr.bf16.mxu0 0
        %2565 = vmatpush1.bf16.msra.mxu0 0
        %2566 = vmatprep.subr.bf16.mxu0 0
        %2567 = vmatpush1.bf16.msra.mxu0 0
        %2568 = vmatprep.subr.bf16.mxu0 0
        %2569 = vmatpush1.bf16.msra.mxu0 0
        %2570 = vmatprep.subr.bf16.mxu0 0
        %2571 = vmatpush1.bf16.msra.mxu0 0
        %2572 = vmatprep.subr.bf16.mxu0 0
        %2573 = vmatpush1.bf16.msra.mxu0 0
        %2574 = vmatprep.subr.bf16.mxu0 0
        %2575 = vmatpush1.bf16.msra.mxu0 0
        %2576 = vmatprep.subr.bf16.mxu0 0
        %2577 = vmatpush1.bf16.msra.mxu0 0
        %2578 = vmatprep.subr.bf16.mxu0 %v2562
        %2579 = vmatpush1.bf16.msra.mxu0 %v2559
        %2580 = vmatprep.subr.bf16.mxu0 0
        %2581 = vmatpush2.bf16.msra.mxu0 0
        %2582 = vmatprep.subr.bf16.mxu0 0
        %2583 = vmatpush2.bf16.msra.mxu0 0
        %2584 = vmatprep.subr.bf16.mxu0 0
        %2585 = vmatpush2.bf16.msra.mxu0 0
        %2586 = vmatprep.subr.bf16.mxu0 0
        %2587 = vmatpush2.bf16.msra.mxu0 0
        %2588 = vmatprep.subr.bf16.mxu0 0
        %2589 = vmatpush2.bf16.msra.mxu0 0
        %2590 = vmatprep.subr.bf16.mxu0 0
        %2591 = vmatpush2.bf16.msra.mxu0 0
        %2592 = vmatprep.subr.bf16.mxu0 0
        %2593 = vmatpush2.bf16.msra.mxu0 0
        %2594 = vmatprep.subr.bf16.mxu0 0
        %2595 = vmatpush2.bf16.msra.mxu0 0
        %2596 = vmatprep.mubr.bf16.mxu0 0
        %2597 = vmatmul.mubr.bf16.gmra.mxu0 %v2538
        %v2598 = vpop.f32.mrf.mxu0
        %v2599 = vadd.f32 0.0, %v2598
        %v2600 = vpop.f32.mrf.mxu0
        %v2601 = vadd.f32 0.0, %v2600
        %v2602 = vpop.f32.mrf.mxu0
        %v2603 = vadd.f32 0.0, %v2602
        %v2604 = vpop.f32.mrf.mxu0
        %v2605 = vadd.f32 0.0, %v2604
        %2606 = vmatprep.mubr.bf16.mxu0 0
        %2607 = vmatmul.mubr.bf16.gmra.mxu0 %v2541
        %v2608 = vpop.f32.mrf.mxu0
        %v2609 = vadd.f32 0.0, %v2608
        %v2610 = vpop.f32.mrf.mxu0
        %v2611 = vadd.f32 0.0, %v2610
        %v2612 = vpop.f32.mrf.mxu0
        %v2613 = vadd.f32 0.0, %v2612
        %v2614 = vpop.f32.mrf.mxu0
        %v2615 = vadd.f32 0.0, %v2614
        %2616 = vmatprep.mubr.bf16.mxu0 0
        %2617 = vmatmul.mubr.bf16.gmra.mxu0 %v2544
        %v2618 = vpop.f32.mrf.mxu0
        %v2619 = vadd.f32 0.0, %v2618
        %v2620 = vpop.f32.mrf.mxu0
        %v2621 = vadd.f32 0.0, %v2620
        %v2622 = vpop.f32.mrf.mxu0
        %v2623 = vadd.f32 0.0, %v2622
        %v2624 = vpop.f32.mrf.mxu0
        %v2625 = vadd.f32 0.0, %v2624
        %2626 = vmatprep.mubr.bf16.mxu0 0
        %2627 = vmatmul.mubr.bf16.gmra.mxu0 %v2547
        %v2628 = vpop.f32.mrf.mxu0
        %v2629 = vadd.f32 0.0, %v2628
        %v2630 = vpop.f32.mrf.mxu0
        %v2631 = vadd.f32 0.0, %v2630
        %v2632 = vpop.f32.mrf.mxu0
        %v2633 = vadd.f32 0.0, %v2632
        %v2634 = vpop.f32.mrf.mxu0
        %v2635 = vadd.f32 0.0, %v2634
        %2636 = vmatprep.mubr.bf16.mxu0 0
        %2637 = vmatmul.mubr.bf16.gmra.mxu0 %v2550
        %v2638 = vpop.f32.mrf.mxu0
        %v2639 = vadd.f32 0.0, %v2638
        %v2640 = vpop.f32.mrf.mxu0
        %v2641 = vadd.f32 0.0, %v2640
        %v2642 = vpop.f32.mrf.mxu0
        %v2643 = vadd.f32 0.0, %v2642
        %v2644 = vpop.f32.mrf.mxu0
        %v2645 = vadd.f32 0.0, %v2644
        %2646 = vmatprep.mubr.bf16.mxu0 0
        %2647 = vmatmul.mubr.bf16.gmra.mxu0 %v2553
        %v2648 = vpop.f32.mrf.mxu0
        %v2649 = vadd.f32 0.0, %v2648
        %v2650 = vpop.f32.mrf.mxu0
        %v2651 = vadd.f32 0.0, %v2650
        %v2652 = vpop.f32.mrf.mxu0
        %v2653 = vadd.f32 0.0, %v2652
        %v2654 = vpop.f32.mrf.mxu0
        %v2655 = vadd.f32 0.0, %v2654
        %2656 = vmatprep.mubr.bf16.mxu0 0
        %2657 = vmatmul.mubr.bf16.gmra.mxu0 %v2556
        %v2658 = vpop.f32.mrf.mxu0
        %v2659 = vadd.f32 0.0, %v2658
        %v2660 = vpop.f32.mrf.mxu0
        %v2661 = vadd.f32 0.0, %v2660
        %v2662 = vpop.f32.mrf.mxu0
        %v2663 = vadd.f32 0.0, %v2662
        %v2664 = vpop.f32.mrf.mxu0
        %v2665 = vadd.f32 0.0, %v2664
        %2666 = vdwg.mxu0
        %v2667 = vadd.f32 %v2371, %v2599
        %v2668 = vadd.f32 %v2372, %v2601
        %v2669 = vadd.f32 %v2373, %v2603
        %v2670 = vadd.f32 %v2374, %v2605
        %v2671 = vadd.f32 %v2375, %v2609
        %v2672 = vadd.f32 %v2376, %v2611
        %v2673 = vadd.f32 %v2377, %v2613
        %v2674 = vadd.f32 %v2378, %v2615
        %v2675 = vadd.f32 %v2379, %v2619
        %v2676 = vadd.f32 %v2380, %v2621
        %v2677 = vadd.f32 %v2381, %v2623
        %v2678 = vadd.f32 %v2382, %v2625
        %v2679 = vadd.f32 %v2383, %v2629
        %v2680 = vadd.f32 %v2384, %v2631
        %v2681 = vadd.f32 %v2385, %v2633
        %v2682 = vadd.f32 %v2386, %v2635
        %v2683 = vadd.f32 %v2387, %v2639
        %v2684 = vadd.f32 %v2388, %v2641
        %v2685 = vadd.f32 %v2389, %v2643
        %v2686 = vadd.f32 %v2390, %v2645
        %v2687 = vadd.f32 %v2391, %v2649
        %v2688 = vadd.f32 %v2392, %v2651
        %v2689 = vadd.f32 %v2393, %v2653
        %v2690 = vadd.f32 %v2394, %v2655
        %v2691 = vadd.f32 %v2395, %v2659
        %v2692 = vadd.f32 %v2396, %v2661
        %v2693 = vadd.f32 %v2397, %v2663
        %v2694 = vadd.f32 %v2398, %v2665
        %v2695 = vld [vmem:[%s2] sm:$0x3]
        %v2697 = vlaneseq
        %v2698 = vshrl.u32 %v2697, 7
        %v2699 = vsub.s32 0, %v2698
        %v2700 = vrot.slane %v2695, %v2699
        %v2701 = vlaneseq
        %v2702 = vshrl.u32 %v2701, 7
        %v2703 = vsub.s32 1, %v2702
        %v2704 = vrot.slane %v2695, %v2703
        %v2707 = vadd.f32 %v2667, %v2700
        %v2708 = vadd.f32 %v2668, %v2704
        %v2709 = vadd.f32 %v2669, %v2700
        %v2710 = vadd.f32 %v2670, %v2704
        %v2711 = vadd.f32 %v2671, %v2700
        %v2712 = vadd.f32 %v2672, %v2704
        %v2713 = vadd.f32 %v2673, %v2700
        %v2714 = vadd.f32 %v2674, %v2704
        %v2715 = vadd.f32 %v2675, %v2700
        %v2716 = vadd.f32 %v2676, %v2704
        %v2717 = vadd.f32 %v2677, %v2700
        %v2718 = vadd.f32 %v2678, %v2704
        %v2719 = vadd.f32 %v2679, %v2700
        %v2720 = vadd.f32 %v2680, %v2704
        %v2721 = vadd.f32 %v2681, %v2700
        %v2722 = vadd.f32 %v2682, %v2704
        %v2723 = vadd.f32 %v2683, %v2700
        %v2724 = vadd.f32 %v2684, %v2704
        %v2725 = vadd.f32 %v2685, %v2700
        %v2726 = vadd.f32 %v2686, %v2704
        %v2727 = vadd.f32 %v2687, %v2700
        %v2728 = vadd.f32 %v2688, %v2704
        %v2729 = vadd.f32 %v2689, %v2700
        %v2730 = vadd.f32 %v2690, %v2704
        %v2731 = vadd.f32 %v2691, %v2700
        %v2732 = vadd.f32 %v2692, %v2704
        %v2733 = vadd.f32 %v2693, %v2700
        %v2734 = vadd.f32 %v2694, %v2704
        %v2735 = vmax.f32 %v2707, 0.0
        %v2736 = vmax.f32 %v2708, 0.0
        %v2737 = vmax.f32 %v2709, 0.0
        %v2738 = vmax.f32 %v2710, 0.0
        %v2739 = vmax.f32 %v2711, 0.0
        %v2740 = vmax.f32 %v2712, 0.0
        %v2741 = vmax.f32 %v2713, 0.0
        %v2742 = vmax.f32 %v2714, 0.0
        %v2743 = vmax.f32 %v2715, 0.0
        %v2744 = vmax.f32 %v2716, 0.0
        %v2745 = vmax.f32 %v2717, 0.0
        %v2746 = vmax.f32 %v2718, 0.0
        %v2747 = vmax.f32 %v2719, 0.0
        %v2748 = vmax.f32 %v2720, 0.0
        %v2749 = vmax.f32 %v2721, 0.0
        %v2750 = vmax.f32 %v2722, 0.0
        %v2751 = vmax.f32 %v2723, 0.0
        %v2752 = vmax.f32 %v2724, 0.0
        %v2753 = vmax.f32 %v2725, 0.0
        %v2754 = vmax.f32 %v2726, 0.0
        %v2755 = vmax.f32 %v2727, 0.0
        %v2756 = vmax.f32 %v2728, 0.0
        %v2757 = vmax.f32 %v2729, 0.0
        %v2758 = vmax.f32 %v2730, 0.0
        %v2759 = vmax.f32 %v2731, 0.0
        %v2760 = vmax.f32 %v2732, 0.0
        %v2761 = vmax.f32 %v2733, 0.0
        %v2762 = vmax.f32 %v2734, 0.0
        %v2791 = vcombine.low %v2735, %v2736
        %v2792 = vcombine.high %v2735, %v2736
        %v2794 = vunpack.c.l.s4 1983009808
        %v2795 = vunpack.c.0.s8 %v2794
        %v2796 = vlaneseq
        %v2797 = vshrl.u32 %v2796, 7
        %v2798 = vsub.s32 %v2795, %v2797
        %v2799 = vrot.slane %v2791, %v2798
        %v2801 = vunpack.c.l.s4 1983009808
        %v2802 = vunpack.c.0.s8 %v2801
        %v2803 = vlaneseq
        %v2804 = vshrl.u32 %v2803, 7
        %v2805 = vsub.s32 %v2802, %v2804
        %v2806 = vrot.slane %v2792, %v2805
        %v2807 = vcombine.high %v2799, %v2799
        %v2808 = vcombine.high %v2806, %v2806
        %v2809 = vcombine.low %v2737, %v2738
        %v2810 = vcombine.high %v2737, %v2738
        %v2812 = vunpack.c.l.s4 1983009808
        %v2813 = vunpack.c.0.s8 %v2812
        %v2814 = vlaneseq
        %v2815 = vshrl.u32 %v2814, 7
        %v2816 = vsub.s32 %v2813, %v2815
        %v2817 = vrot.slane %v2809, %v2816
        %v2819 = vunpack.c.l.s4 1983009808
        %v2820 = vunpack.c.0.s8 %v2819
        %v2821 = vlaneseq
        %v2822 = vshrl.u32 %v2821, 7
        %v2823 = vsub.s32 %v2820, %v2822
        %v2824 = vrot.slane %v2810, %v2823
        %v2825 = vcombine.high %v2817, %v2817
        %v2826 = vcombine.high %v2824, %v2824
        %v2827 = vcombine.low %v2739, %v2740
        %v2828 = vcombine.high %v2739, %v2740
        %v2830 = vunpack.c.l.s4 1983009808
        %v2831 = vunpack.c.0.s8 %v2830
        %v2832 = vlaneseq
        %v2833 = vshrl.u32 %v2832, 7
        %v2834 = vsub.s32 %v2831, %v2833
        %v2835 = vrot.slane %v2827, %v2834
        %v2837 = vunpack.c.l.s4 1983009808
        %v2838 = vunpack.c.0.s8 %v2837
        %v2839 = vlaneseq
        %v2840 = vshrl.u32 %v2839, 7
        %v2841 = vsub.s32 %v2838, %v2840
        %v2842 = vrot.slane %v2828, %v2841
        %v2843 = vcombine.high %v2835, %v2835
        %v2844 = vcombine.high %v2842, %v2842
        %v2845 = vcombine.low %v2741, %v2742
        %v2846 = vcombine.high %v2741, %v2742
        %v2848 = vunpack.c.l.s4 1983009808
        %v2849 = vunpack.c.0.s8 %v2848
        %v2850 = vlaneseq
        %v2851 = vshrl.u32 %v2850, 7
        %v2852 = vsub.s32 %v2849, %v2851
        %v2853 = vrot.slane %v2845, %v2852
        %v2855 = vunpack.c.l.s4 1983009808
        %v2856 = vunpack.c.0.s8 %v2855
        %v2857 = vlaneseq
        %v2858 = vshrl.u32 %v2857, 7
        %v2859 = vsub.s32 %v2856, %v2858
        %v2860 = vrot.slane %v2846, %v2859
        %v2861 = vcombine.high %v2853, %v2853
        %v2862 = vcombine.high %v2860, %v2860
        %v2863 = vcombine.low %v2743, %v2744
        %v2864 = vcombine.high %v2743, %v2744
        %v2866 = vunpack.c.l.s4 1983009808
        %v2867 = vunpack.c.0.s8 %v2866
        %v2868 = vlaneseq
        %v2869 = vshrl.u32 %v2868, 7
        %v2870 = vsub.s32 %v2867, %v2869
        %v2871 = vrot.slane %v2863, %v2870
        %v2873 = vunpack.c.l.s4 1983009808
        %v2874 = vunpack.c.0.s8 %v2873
        %v2875 = vlaneseq
        %v2876 = vshrl.u32 %v2875, 7
        %v2877 = vsub.s32 %v2874, %v2876
        %v2878 = vrot.slane %v2864, %v2877
        %v2879 = vcombine.high %v2871, %v2871
        %v2880 = vcombine.high %v2878, %v2878
        %v2881 = vcombine.low %v2745, %v2746
        %v2882 = vcombine.high %v2745, %v2746
        %v2884 = vunpack.c.l.s4 1983009808
        %v2885 = vunpack.c.0.s8 %v2884
        %v2886 = vlaneseq
        %v2887 = vshrl.u32 %v2886, 7
        %v2888 = vsub.s32 %v2885, %v2887
        %v2889 = vrot.slane %v2881, %v2888
        %v2891 = vunpack.c.l.s4 1983009808
        %v2892 = vunpack.c.0.s8 %v2891
        %v2893 = vlaneseq
        %v2894 = vshrl.u32 %v2893, 7
        %v2895 = vsub.s32 %v2892, %v2894
        %v2896 = vrot.slane %v2882, %v2895
        %v2897 = vcombine.high %v2889, %v2889
        %v2898 = vcombine.high %v2896, %v2896
        %v2899 = vcombine.low %v2747, %v2748
        %v2900 = vcombine.high %v2747, %v2748
        %v2902 = vunpack.c.l.s4 1983009808
        %v2903 = vunpack.c.0.s8 %v2902
        %v2904 = vlaneseq
        %v2905 = vshrl.u32 %v2904, 7
        %v2906 = vsub.s32 %v2903, %v2905
        %v2907 = vrot.slane %v2899, %v2906
        %v2909 = vunpack.c.l.s4 1983009808
        %v2910 = vunpack.c.0.s8 %v2909
        %v2911 = vlaneseq
        %v2912 = vshrl.u32 %v2911, 7
        %v2913 = vsub.s32 %v2910, %v2912
        %v2914 = vrot.slane %v2900, %v2913
        %v2915 = vcombine.high %v2907, %v2907
        %v2916 = vcombine.high %v2914, %v2914
        %v2917 = vcombine.low %v2749, %v2750
        %v2918 = vcombine.high %v2749, %v2750
        %v2920 = vunpack.c.l.s4 1983009808
        %v2921 = vunpack.c.0.s8 %v2920
        %v2922 = vlaneseq
        %v2923 = vshrl.u32 %v2922, 7
        %v2924 = vsub.s32 %v2921, %v2923
        %v2925 = vrot.slane %v2917, %v2924
        %v2927 = vunpack.c.l.s4 1983009808
        %v2928 = vunpack.c.0.s8 %v2927
        %v2929 = vlaneseq
        %v2930 = vshrl.u32 %v2929, 7
        %v2931 = vsub.s32 %v2928, %v2930
        %v2932 = vrot.slane %v2918, %v2931
        %v2933 = vcombine.high %v2925, %v2925
        %v2934 = vcombine.high %v2932, %v2932
        %v2935 = vcombine.low %v2751, %v2752
        %v2936 = vcombine.high %v2751, %v2752
        %v2938 = vunpack.c.l.s4 1983009808
        %v2939 = vunpack.c.0.s8 %v2938
        %v2940 = vlaneseq
        %v2941 = vshrl.u32 %v2940, 7
        %v2942 = vsub.s32 %v2939, %v2941
        %v2943 = vrot.slane %v2935, %v2942
        %v2945 = vunpack.c.l.s4 1983009808
        %v2946 = vunpack.c.0.s8 %v2945
        %v2947 = vlaneseq
        %v2948 = vshrl.u32 %v2947, 7
        %v2949 = vsub.s32 %v2946, %v2948
        %v2950 = vrot.slane %v2936, %v2949
        %v2951 = vcombine.high %v2943, %v2943
        %v2952 = vcombine.high %v2950, %v2950
        %v2953 = vcombine.low %v2753, %v2754
        %v2954 = vcombine.high %v2753, %v2754
        %v2956 = vunpack.c.l.s4 1983009808
        %v2957 = vunpack.c.0.s8 %v2956
        %v2958 = vlaneseq
        %v2959 = vshrl.u32 %v2958, 7
        %v2960 = vsub.s32 %v2957, %v2959
        %v2961 = vrot.slane %v2953, %v2960
        %v2963 = vunpack.c.l.s4 1983009808
        %v2964 = vunpack.c.0.s8 %v2963
        %v2965 = vlaneseq
        %v2966 = vshrl.u32 %v2965, 7
        %v2967 = vsub.s32 %v2964, %v2966
        %v2968 = vrot.slane %v2954, %v2967
        %v2969 = vcombine.high %v2961, %v2961
        %v2970 = vcombine.high %v2968, %v2968
        %v2971 = vcombine.low %v2755, %v2756
        %v2972 = vcombine.high %v2755, %v2756
        %v2974 = vunpack.c.l.s4 1983009808
        %v2975 = vunpack.c.0.s8 %v2974
        %v2976 = vlaneseq
        %v2977 = vshrl.u32 %v2976, 7
        %v2978 = vsub.s32 %v2975, %v2977
        %v2979 = vrot.slane %v2971, %v2978
        %v2981 = vunpack.c.l.s4 1983009808
        %v2982 = vunpack.c.0.s8 %v2981
        %v2983 = vlaneseq
        %v2984 = vshrl.u32 %v2983, 7
        %v2985 = vsub.s32 %v2982, %v2984
        %v2986 = vrot.slane %v2972, %v2985
        %v2987 = vcombine.high %v2979, %v2979
        %v2988 = vcombine.high %v2986, %v2986
        %v2989 = vcombine.low %v2757, %v2758
        %v2990 = vcombine.high %v2757, %v2758
        %v2992 = vunpack.c.l.s4 1983009808
        %v2993 = vunpack.c.0.s8 %v2992
        %v2994 = vlaneseq
        %v2995 = vshrl.u32 %v2994, 7
        %v2996 = vsub.s32 %v2993, %v2995
        %v2997 = vrot.slane %v2989, %v2996
        %v2999 = vunpack.c.l.s4 1983009808
        %v3000 = vunpack.c.0.s8 %v2999
        %v3001 = vlaneseq
        %v3002 = vshrl.u32 %v3001, 7
        %v3003 = vsub.s32 %v3000, %v3002
        %v3004 = vrot.slane %v2990, %v3003
        %v3005 = vcombine.high %v2997, %v2997
        %v3006 = vcombine.high %v3004, %v3004
        %v3007 = vcombine.low %v2759, %v2760
        %v3008 = vcombine.high %v2759, %v2760
        %v3010 = vunpack.c.l.s4 1983009808
        %v3011 = vunpack.c.0.s8 %v3010
        %v3012 = vlaneseq
        %v3013 = vshrl.u32 %v3012, 7
        %v3014 = vsub.s32 %v3011, %v3013
        %v3015 = vrot.slane %v3007, %v3014
        %v3017 = vunpack.c.l.s4 1983009808
        %v3018 = vunpack.c.0.s8 %v3017
        %v3019 = vlaneseq
        %v3020 = vshrl.u32 %v3019, 7
        %v3021 = vsub.s32 %v3018, %v3020
        %v3022 = vrot.slane %v3008, %v3021
        %v3023 = vcombine.high %v3015, %v3015
        %v3024 = vcombine.high %v3022, %v3022
        %v3025 = vcombine.low %v2761, %v2762
        %v3026 = vcombine.high %v2761, %v2762
        %v3028 = vunpack.c.l.s4 1983009808
        %v3029 = vunpack.c.0.s8 %v3028
        %v3030 = vlaneseq
        %v3031 = vshrl.u32 %v3030, 7
        %v3032 = vsub.s32 %v3029, %v3031
        %v3033 = vrot.slane %v3025, %v3032
        %v3035 = vunpack.c.l.s4 1983009808
        %v3036 = vunpack.c.0.s8 %v3035
        %v3037 = vlaneseq
        %v3038 = vshrl.u32 %v3037, 7
        %v3039 = vsub.s32 %v3036, %v3038
        %v3040 = vrot.slane %v3026, %v3039
        %v3041 = vcombine.high %v3033, %v3033
        %v3042 = vcombine.high %v3040, %v3040
        %v3043 = vlaneseq
        %v3044 = vshrl.u32 %v3043, 7
        %v3045 = vadd.s32 %v3044, 8
        %v3046 = vlaneseq
        %v3047 = vand.u32 %v3046, 127
        %v3048 = vadd.s32 %v3047, 128
        %vm3049 = vcmp.lt.s32.totalorder %v3047, 50
        %vm3050 = vcmp.lt.s32.totalorder %v3048, 50
        %vm3051 = vcmp.lt.s32.totalorder %v3047, 100
        %vm3052 = vcmp.lt.s32.totalorder %v3048, 100
        %v3053 = vsel %vm3051, 1, 2
        %v3054 = vsel %vm3052, 1, 2
        %v3055 = vsel %vm3049, 0, %v3053
        %v3056 = vsel %vm3050, 0, %v3054
        %v3057 = vsub.s32 14, %v3055
        %v3058 = vsub.s32 14, %v3056
        %vm3059 = vcmp.lt.s32.totalorder %v3044, %v3057
        %vm3060 = vcmp.lt.s32.totalorder %v3044, %v3058
        %vm3061 = vcmp.lt.s32.totalorder %v3045, %v3057
        %vm3062 = vcmp.lt.s32.totalorder %v3045, %v3058
        %v3063 = vsel %vm3059, 1, 0
        %v3064 = vsel %vm3060, 1, 0
        %v3065 = vsel %vm3061, 1, 0
        %v3066 = vsel %vm3062, 1, 0
        %vm3067 = vcmp.eq.s32.totalorder %v3063, 1
        %vm3068 = vcmp.eq.s32.totalorder %v3064, 1
        %vm3069 = vcmp.eq.s32.totalorder %v3065, 1
        %vm3070 = vcmp.eq.s32.totalorder %v3066, 1
        %v3071 = vcombine.low %v2799, %v2807
        %v3072 = vcombine.low %v2806, %v2808
        %v3074 = vunpack.c.l.s4 1983009808
        %v3075 = vunpack.c.0.s8 %v3074
        %v3076 = vlaneseq
        %v3077 = vshrl.u32 %v3076, 7
        %v3078 = vsub.s32 %v3075, %v3077
        %v3079 = vrot.slane %v3071, %v3078
        %v3081 = vunpack.c.l.s4 1983009808
        %v3082 = vunpack.c.0.s8 %v3081
        %v3083 = vlaneseq
        %v3084 = vshrl.u32 %v3083, 7
        %v3085 = vsub.s32 %v3082, %v3084
        %v3086 = vrot.slane %v3072, %v3085
        %v3087 = vcombine.low %v3079, %v3086
        %v3088 = vcombine.high %v3079, %v3086
        %v3089 = vcombine.low %v2817, %v2825
        %v3091 = vunpack.c.l.s4 1983009808
        %v3092 = vunpack.c.0.s8 %v3091
        %v3093 = vlaneseq
        %v3094 = vshrl.u32 %v3093, 7
        %v3095 = vsub.s32 %v3092, %v3094
        %v3096 = vrot.slane %v3089, %v3095
        %v3098 = vunpack.c.l.s4 1983009808
        %v3099 = vunpack.c.0.s8 %v3098
        %v3100 = vlaneseq
        %v3101 = vshrl.u32 %v3100, 7
        %v3102 = vsub.s32 %v3099, %v3101
        %v3103 = vrot.slane %v2824, %v3102
        %v3104 = vcombine.low %v3096, %v3103
        %v3105 = vcombine.high %v3096, %v3103
        %v3106 = vcombine.low %v2826, %v2835
        %v3107 = vcombine.low %v2843, %v2842
        %v3109 = vunpack.c.l.s4 1983009808
        %v3110 = vunpack.c.0.s8 %v3109
        %v3111 = vlaneseq
        %v3112 = vshrl.u32 %v3111, 7
        %v3113 = vsub.s32 %v3110, %v3112
        %v3114 = vrot.slane %v3106, %v3113
        %v3116 = vunpack.c.l.s4 1983009808
        %v3117 = vunpack.c.0.s8 %v3116
        %v3118 = vlaneseq
        %v3119 = vshrl.u32 %v3118, 7
        %v3120 = vsub.s32 %v3117, %v3119
        %v3121 = vrot.slane %v3107, %v3120
        %v3122 = vcombine.low %v3114, %v3121
        %v3123 = vcombine.high %v3114, %v3121
        %v3124 = vcombine.low %v2844, %v2853
        %v3126 = vunpack.c.l.s4 1983009808
        %v3127 = vunpack.c.0.s8 %v3126
        %v3128 = vlaneseq
        %v3129 = vshrl.u32 %v3128, 7
        %v3130 = vsub.s32 %v3127, %v3129
        %v3131 = vrot.slane %v3124, %v3130
        %v3133 = vunpack.c.l.s4 1983009808
        %v3134 = vunpack.c.0.s8 %v3133
        %v3135 = vlaneseq
        %v3136 = vshrl.u32 %v3135, 7
        %v3137 = vsub.s32 %v3134, %v3136
        %v3138 = vrot.slane %v2861, %v3137
        %v3139 = vcombine.low %v3131, %v3138
        %v3140 = vcombine.high %v3131, %v3138
        %v3141 = vcombine.low %v2860, %v2862
        %v3142 = vcombine.low %v2871, %v2879
        %v3144 = vunpack.c.l.s4 1983009808
        %v3145 = vunpack.c.0.s8 %v3144
        %v3146 = vlaneseq
        %v3147 = vshrl.u32 %v3146, 7
        %v3148 = vsub.s32 %v3145, %v3147
        %v3149 = vrot.slane %v3141, %v3148
        %v3151 = vunpack.c.l.s4 1983009808
        %v3152 = vunpack.c.0.s8 %v3151
        %v3153 = vlaneseq
        %v3154 = vshrl.u32 %v3153, 7
        %v3155 = vsub.s32 %v3152, %v3154
        %v3156 = vrot.slane %v3142, %v3155
        %v3157 = vcombine.low %v3149, %v3156
        %v3158 = vcombine.high %v3149, %v3156
        %v3159 = vcombine.low %v2878, %v2880
        %v3161 = vunpack.c.l.s4 1983009808
        %v3162 = vunpack.c.0.s8 %v3161
        %v3163 = vlaneseq
        %v3164 = vshrl.u32 %v3163, 7
        %v3165 = vsub.s32 %v3162, %v3164
        %v3166 = vrot.slane %v3159, %v3165
        %v3168 = vunpack.c.l.s4 1983009808
        %v3169 = vunpack.c.0.s8 %v3168
        %v3170 = vlaneseq
        %v3171 = vshrl.u32 %v3170, 7
        %v3172 = vsub.s32 %v3169, %v3171
        %v3173 = vrot.slane %v2889, %v3172
        %v3174 = vcombine.low %v3166, %v3173
        %v3175 = vcombine.high %v3166, %v3173
        %v3176 = vcombine.low %v2897, %v2896
        %v3177 = vcombine.low %v2898, %v2907
        %v3179 = vunpack.c.l.s4 1983009808
        %v3180 = vunpack.c.0.s8 %v3179
        %v3181 = vlaneseq
        %v3182 = vshrl.u32 %v3181, 7
        %v3183 = vsub.s32 %v3180, %v3182
        %v3184 = vrot.slane %v3176, %v3183
        %v3186 = vunpack.c.l.s4 1983009808
        %v3187 = vunpack.c.0.s8 %v3186
        %v3188 = vlaneseq
        %v3189 = vshrl.u32 %v3188, 7
        %v3190 = vsub.s32 %v3187, %v3189
        %v3191 = vrot.slane %v3177, %v3190
        %v3192 = vcombine.low %v3184, %v3191
        %v3193 = vcombine.high %v3184, %v3191
        %v3194 = vcombine.low %v2915, %v2914
        %v3196 = vunpack.c.l.s4 1983009808
        %v3197 = vunpack.c.0.s8 %v3196
        %v3198 = vlaneseq
        %v3199 = vshrl.u32 %v3198, 7
        %v3200 = vsub.s32 %v3197, %v3199
        %v3201 = vrot.slane %v3194, %v3200
        %v3203 = vunpack.c.l.s4 1983009808
        %v3204 = vunpack.c.0.s8 %v3203
        %v3205 = vlaneseq
        %v3206 = vshrl.u32 %v3205, 7
        %v3207 = vsub.s32 %v3204, %v3206
        %v3208 = vrot.slane %v2916, %v3207
        %v3209 = vcombine.low %v3201, %v3208
        %v3210 = vcombine.high %v3201, %v3208
        %v3211 = vcombine.low %v2925, %v2933
        %v3212 = vcombine.low %v2932, %v2934
        %v3214 = vunpack.c.l.s4 1983009808
        %v3215 = vunpack.c.0.s8 %v3214
        %v3216 = vlaneseq
        %v3217 = vshrl.u32 %v3216, 7
        %v3218 = vsub.s32 %v3215, %v3217
        %v3219 = vrot.slane %v3211, %v3218
        %v3221 = vunpack.c.l.s4 1983009808
        %v3222 = vunpack.c.0.s8 %v3221
        %v3223 = vlaneseq
        %v3224 = vshrl.u32 %v3223, 7
        %v3225 = vsub.s32 %v3222, %v3224
        %v3226 = vrot.slane %v3212, %v3225
        %v3227 = vcombine.low %v3219, %v3226
        %v3228 = vcombine.high %v3219, %v3226
        %v3229 = vcombine.low %v2943, %v2951
        %v3231 = vunpack.c.l.s4 1983009808
        %v3232 = vunpack.c.0.s8 %v3231
        %v3233 = vlaneseq
        %v3234 = vshrl.u32 %v3233, 7
        %v3235 = vsub.s32 %v3232, %v3234
        %v3236 = vrot.slane %v3229, %v3235
        %v3238 = vunpack.c.l.s4 1983009808
        %v3239 = vunpack.c.0.s8 %v3238
        %v3240 = vlaneseq
        %v3241 = vshrl.u32 %v3240, 7
        %v3242 = vsub.s32 %v3239, %v3241
        %v3243 = vrot.slane %v2950, %v3242
        %v3244 = vcombine.low %v3236, %v3243
        %v3245 = vcombine.high %v3236, %v3243
        %v3246 = vcombine.low %v2952, %v2961
        %v3247 = vcombine.low %v2969, %v2968
        %v3249 = vunpack.c.l.s4 1983009808
        %v3250 = vunpack.c.0.s8 %v3249
        %v3251 = vlaneseq
        %v3252 = vshrl.u32 %v3251, 7
        %v3253 = vsub.s32 %v3250, %v3252
        %v3254 = vrot.slane %v3246, %v3253
        %v3256 = vunpack.c.l.s4 1983009808
        %v3257 = vunpack.c.0.s8 %v3256
        %v3258 = vlaneseq
        %v3259 = vshrl.u32 %v3258, 7
        %v3260 = vsub.s32 %v3257, %v3259
        %v3261 = vrot.slane %v3247, %v3260
        %v3262 = vcombine.low %v3254, %v3261
        %v3263 = vcombine.high %v3254, %v3261
        %v3264 = vcombine.low %v2970, %v2979
        %v3266 = vunpack.c.l.s4 1983009808
        %v3267 = vunpack.c.0.s8 %v3266
        %v3268 = vlaneseq
        %v3269 = vshrl.u32 %v3268, 7
        %v3270 = vsub.s32 %v3267, %v3269
        %v3271 = vrot.slane %v3264, %v3270
        %v3273 = vunpack.c.l.s4 1983009808
        %v3274 = vunpack.c.0.s8 %v3273
        %v3275 = vlaneseq
        %v3276 = vshrl.u32 %v3275, 7
        %v3277 = vsub.s32 %v3274, %v3276
        %v3278 = vrot.slane %v2987, %v3277
        %v3279 = vcombine.low %v3271, %v3278
        %v3280 = vcombine.high %v3271, %v3278
        %v3281 = vcombine.low %v2986, %v2988
        %v3282 = vcombine.low %v2997, %v3005
        %v3284 = vunpack.c.l.s4 1983009808
        %v3285 = vunpack.c.0.s8 %v3284
        %v3286 = vlaneseq
        %v3287 = vshrl.u32 %v3286, 7
        %v3288 = vsub.s32 %v3285, %v3287
        %v3289 = vrot.slane %v3281, %v3288
        %v3291 = vunpack.c.l.s4 1983009808
        %v3292 = vunpack.c.0.s8 %v3291
        %v3293 = vlaneseq
        %v3294 = vshrl.u32 %v3293, 7
        %v3295 = vsub.s32 %v3292, %v3294
        %v3296 = vrot.slane %v3282, %v3295
        %v3297 = vcombine.low %v3289, %v3296
        %v3298 = vcombine.high %v3289, %v3296
        %v3299 = vcombine.low %v3004, %v3006
        %v3301 = vunpack.c.l.s4 1983009808
        %v3302 = vunpack.c.0.s8 %v3301
        %v3303 = vlaneseq
        %v3304 = vshrl.u32 %v3303, 7
        %v3305 = vsub.s32 %v3302, %v3304
        %v3306 = vrot.slane %v3299, %v3305
        %v3308 = vunpack.c.l.s4 1983009808
        %v3309 = vunpack.c.0.s8 %v3308
        %v3310 = vlaneseq
        %v3311 = vshrl.u32 %v3310, 7
        %v3312 = vsub.s32 %v3309, %v3311
        %v3313 = vrot.slane %v3015, %v3312
        %v3314 = vcombine.low %v3306, %v3313
        %v3315 = vcombine.high %v3306, %v3313
        %v3316 = vcombine.low %v3023, %v3022
        %v3317 = vcombine.low %v3024, %v3033
        %v3319 = vunpack.c.l.s4 1983009808
        %v3320 = vunpack.c.0.s8 %v3319
        %v3321 = vlaneseq
        %v3322 = vshrl.u32 %v3321, 7
        %v3323 = vsub.s32 %v3320, %v3322
        %v3324 = vrot.slane %v3316, %v3323
        %v3326 = vunpack.c.l.s4 1983009808
        %v3327 = vunpack.c.0.s8 %v3326
        %v3328 = vlaneseq
        %v3329 = vshrl.u32 %v3328, 7
        %v3330 = vsub.s32 %v3327, %v3329
        %v3331 = vrot.slane %v3317, %v3330
        %v3332 = vcombine.low %v3324, %v3331
        %v3333 = vcombine.high %v3324, %v3331
        %v3334 = vcombine.low %v3041, %v3040
        %v3336 = vunpack.c.l.s4 1983009808
        %v3337 = vunpack.c.0.s8 %v3336
        %v3338 = vlaneseq
        %v3339 = vshrl.u32 %v3338, 7
        %v3340 = vsub.s32 %v3337, %v3339
        %v3341 = vrot.slane %v3334, %v3340
        %v3343 = vunpack.c.l.s4 1983009808
        %v3344 = vunpack.c.0.s8 %v3343
        %v3345 = vlaneseq
        %v3346 = vshrl.u32 %v3345, 7
        %v3347 = vsub.s32 %v3344, %v3346
        %v3348 = vrot.slane %v3042, %v3347
        %v3349 = vcombine.low %v3341, %v3348
        %v3350 = vcombine.high %v3341, %v3348
        %v3383 = vsel %vm3067, %v3087, 0.0
        %v3384 = vsel %vm3068, %v3088, 0.0
        %v3385 = vsel %vm3069, %v3104, 0.0
        %v3386 = vsel %vm3070, %v3105, 0.0
        %v3387 = vsel %vm3067, %v3122, 0.0
        %v3388 = vsel %vm3068, %v3123, 0.0
        %v3389 = vsel %vm3069, %v3139, 0.0
        %v3390 = vsel %vm3070, %v3140, 0.0
        %v3391 = vsel %vm3067, %v3157, 0.0
        %v3392 = vsel %vm3068, %v3158, 0.0
        %v3393 = vsel %vm3069, %v3174, 0.0
        %v3394 = vsel %vm3070, %v3175, 0.0
        %v3395 = vsel %vm3067, %v3192, 0.0
        %v3396 = vsel %vm3068, %v3193, 0.0
        %v3397 = vsel %vm3069, %v3209, 0.0
        %v3398 = vsel %vm3070, %v3210, 0.0
        %v3399 = vsel %vm3067, %v3227, 0.0
        %v3400 = vsel %vm3068, %v3228, 0.0
        %v3401 = vsel %vm3069, %v3244, 0.0
        %v3402 = vsel %vm3070, %v3245, 0.0
        %v3403 = vsel %vm3067, %v3262, 0.0
        %v3404 = vsel %vm3068, %v3263, 0.0
        %v3405 = vsel %vm3069, %v3279, 0.0
        %v3406 = vsel %vm3070, %v3280, 0.0
        %v3407 = vsel %vm3067, %v3297, 0.0
        %v3408 = vsel %vm3068, %v3298, 0.0
        %v3409 = vsel %vm3069, %v3314, 0.0
        %v3410 = vsel %vm3070, %v3315, 0.0
        %v3411 = vsel %vm3067, %v3332, 0.0
        %v3412 = vsel %vm3068, %v3333, 0.0
        %v3413 = vsel %vm3069, %v3349, 0.0
        %v3414 = vsel %vm3070, %v3350, 0.0
        %vm3415 = vcmask 1045504
        %v3416 = vsel %vm3415, %v3385, -inf
        %v3417 = vmax.f32 %v3383, %v3416
        %v3418 = vrot.slane %v3417, 4
        %v3419 = vmax.f32 %v3417, %v3418
        %v3420 = vrot.slane %v3419, 2
        %v3421 = vmax.f32 %v3419, %v3420
        %v3422 = vrot.slane %v3421, 1
        %v3423 = vmax.f32 %v3421, %v3422
        %v3424 = vsel %vm3415, %v3386, -inf
        %v3425 = vmax.f32 %v3384, %v3424
        %v3426 = vrot.slane %v3425, 4
        %v3427 = vmax.f32 %v3425, %v3426
        %v3428 = vrot.slane %v3427, 2
        %v3429 = vmax.f32 %v3427, %v3428
        %v3430 = vrot.slane %v3429, 1
        %v3431 = vmax.f32 %v3429, %v3430
        %v3432 = vsel %vm3415, %v3389, -inf
        %v3433 = vmax.f32 %v3387, %v3432
        %v3434 = vrot.slane %v3433, 4
        %v3435 = vmax.f32 %v3433, %v3434
        %v3436 = vrot.slane %v3435, 2
        %v3437 = vmax.f32 %v3435, %v3436
        %v3438 = vrot.slane %v3437, 1
        %v3439 = vmax.f32 %v3437, %v3438
        %v3440 = vsel %vm3415, %v3390, -inf
        %v3441 = vmax.f32 %v3388, %v3440
        %v3442 = vrot.slane %v3441, 4
        %v3443 = vmax.f32 %v3441, %v3442
        %v3444 = vrot.slane %v3443, 2
        %v3445 = vmax.f32 %v3443, %v3444
        %v3446 = vrot.slane %v3445, 1
        %v3447 = vmax.f32 %v3445, %v3446
        %v3448 = vsel %vm3415, %v3393, -inf
        %v3449 = vmax.f32 %v3391, %v3448
        %v3450 = vrot.slane %v3449, 4
        %v3451 = vmax.f32 %v3449, %v3450
        %v3452 = vrot.slane %v3451, 2
        %v3453 = vmax.f32 %v3451, %v3452
        %v3454 = vrot.slane %v3453, 1
        %v3455 = vmax.f32 %v3453, %v3454
        %v3456 = vsel %vm3415, %v3394, -inf
        %v3457 = vmax.f32 %v3392, %v3456
        %v3458 = vrot.slane %v3457, 4
        %v3459 = vmax.f32 %v3457, %v3458
        %v3460 = vrot.slane %v3459, 2
        %v3461 = vmax.f32 %v3459, %v3460
        %v3462 = vrot.slane %v3461, 1
        %v3463 = vmax.f32 %v3461, %v3462
        %v3464 = vsel %vm3415, %v3397, -inf
        %v3465 = vmax.f32 %v3395, %v3464
        %v3466 = vrot.slane %v3465, 4
        %v3467 = vmax.f32 %v3465, %v3466
        %v3468 = vrot.slane %v3467, 2
        %v3469 = vmax.f32 %v3467, %v3468
        %v3470 = vrot.slane %v3469, 1
        %v3471 = vmax.f32 %v3469, %v3470
        %v3472 = vsel %vm3415, %v3398, -inf
        %v3473 = vmax.f32 %v3396, %v3472
        %v3474 = vrot.slane %v3473, 4
        %v3475 = vmax.f32 %v3473, %v3474
        %v3476 = vrot.slane %v3475, 2
        %v3477 = vmax.f32 %v3475, %v3476
        %v3478 = vrot.slane %v3477, 1
        %v3479 = vmax.f32 %v3477, %v3478
        %v3480 = vsel %vm3415, %v3401, -inf
        %v3481 = vmax.f32 %v3399, %v3480
        %v3482 = vrot.slane %v3481, 4
        %v3483 = vmax.f32 %v3481, %v3482
        %v3484 = vrot.slane %v3483, 2
        %v3485 = vmax.f32 %v3483, %v3484
        %v3486 = vrot.slane %v3485, 1
        %v3487 = vmax.f32 %v3485, %v3486
        %v3488 = vsel %vm3415, %v3402, -inf
        %v3489 = vmax.f32 %v3400, %v3488
        %v3490 = vrot.slane %v3489, 4
        %v3491 = vmax.f32 %v3489, %v3490
        %v3492 = vrot.slane %v3491, 2
        %v3493 = vmax.f32 %v3491, %v3492
        %v3494 = vrot.slane %v3493, 1
        %v3495 = vmax.f32 %v3493, %v3494
        %v3496 = vsel %vm3415, %v3405, -inf
        %v3497 = vmax.f32 %v3403, %v3496
        %v3498 = vrot.slane %v3497, 4
        %v3499 = vmax.f32 %v3497, %v3498
        %v3500 = vrot.slane %v3499, 2
        %v3501 = vmax.f32 %v3499, %v3500
        %v3502 = vrot.slane %v3501, 1
        %v3503 = vmax.f32 %v3501, %v3502
        %v3504 = vsel %vm3415, %v3406, -inf
        %v3505 = vmax.f32 %v3404, %v3504
        %v3506 = vrot.slane %v3505, 4
        %v3507 = vmax.f32 %v3505, %v3506
        %v3508 = vrot.slane %v3507, 2
        %v3509 = vmax.f32 %v3507, %v3508
        %v3510 = vrot.slane %v3509, 1
        %v3511 = vmax.f32 %v3509, %v3510
        %v3512 = vsel %vm3415, %v3409, -inf
        %v3513 = vmax.f32 %v3407, %v3512
        %v3514 = vrot.slane %v3513, 4
        %v3515 = vmax.f32 %v3513, %v3514
        %v3516 = vrot.slane %v3515, 2
        %v3517 = vmax.f32 %v3515, %v3516
        %v3518 = vrot.slane %v3517, 1
        %v3519 = vmax.f32 %v3517, %v3518
        %v3520 = vsel %vm3415, %v3410, -inf
        %v3521 = vmax.f32 %v3408, %v3520
        %v3522 = vrot.slane %v3521, 4
        %v3523 = vmax.f32 %v3521, %v3522
        %v3524 = vrot.slane %v3523, 2
        %v3525 = vmax.f32 %v3523, %v3524
        %v3526 = vrot.slane %v3525, 1
        %v3527 = vmax.f32 %v3525, %v3526
        %v3528 = vsel %vm3415, %v3413, -inf
        %v3529 = vmax.f32 %v3411, %v3528
        %v3530 = vrot.slane %v3529, 4
        %v3531 = vmax.f32 %v3529, %v3530
        %v3532 = vrot.slane %v3531, 2
        %v3533 = vmax.f32 %v3531, %v3532
        %v3534 = vrot.slane %v3533, 1
        %v3535 = vmax.f32 %v3533, %v3534
        %v3536 = vsel %vm3415, %v3414, -inf
        %v3537 = vmax.f32 %v3412, %v3536
        %v3538 = vrot.slane %v3537, 4
        %v3539 = vmax.f32 %v3537, %v3538
        %v3540 = vrot.slane %v3539, 2
        %v3541 = vmax.f32 %v3539, %v3540
        %v3542 = vrot.slane %v3541, 1
        %v3543 = vmax.f32 %v3541, %v3542
        %vm3560 = vcmask 1041409
        %v3561 = vsel %vm3560, %v3439, %v3423
        %v3562 = vsel %vm748, %v3455, %v3561
        %vm3563 = vcmask 1043459
        %v3564 = vsel %vm3563, %v3471, %v3562
        %v3565 = vsel %vm750, %v3487, %v3564
        %vm3566 = vcmask 1045509
        %v3567 = vsel %vm3566, %v3503, %v3565
        %v3568 = vsel %vm752, %v3519, %v3567
        %vm3569 = vcmask 1047559
        %v3570 = vsel %vm3569, %v3535, %v3568
        %v3571 = vsel %vm3560, %v3447, %v3431
        %v3572 = vsel %vm748, %v3463, %v3571
        %v3573 = vsel %vm3563, %v3479, %v3572
        %v3574 = vsel %vm750, %v3495, %v3573
        %v3575 = vsel %vm3566, %v3511, %v3574
        %v3576 = vsel %vm752, %v3527, %v3575
        %v3577 = vsel %vm3569, %v3543, %v3576
        %3580 = vst [vmem:[%s166] sm:$0xff] %v3570
        %3581 = vst [vmem:[%s166 + $0x8] sm:$0xff] %v3577
        %s3582 = sand.u32 %s93, 1
        %s3583 = scalar_lea.sflag [#allocation3], %s3582
        %s3584 = sand.u32 %s93, 1
        %s3585 = smul.addr %s3584, 16
        %s3586 = scalar_lea.vmem [#allocation2], %s3585
        // Predicated region
        $region33: #{cnn_forward.1} parent=31 // pred_check
          %p3587 = pneg %p103
        $region34: #{cnn_forward.1} parent=31 // pred_check_branch
          %3589 = sbr.rel (%p3587) target = $region36
        $region35: #{cnn_forward.1} parent=31 // pred_region
          %s3591 = ssub.s32 256, 256
          %3592 = vsyncadd %s3583, %s3591
          %s3593 = smul.addr %s17, 2
          %s3594 = smul.addr %s3593, 128
          %s3595 = scalar_lea.hbm %s3, %s3594
          %s3597 = sshll.u32 %s3586, 4
          %s3598 = int_to_ptr.vmem [resolvable:$true] %s3597
          %3600 = dma.vmem_to_hbm [thread:$0]  %s3598, 256, %s3595, %s3583
        $region36: #{cnn_forward.1} parent=31 // pred_fallthru
          _
      $region32: #{cnn_forward.1} parent=5 // pred_fallthru
        _
      %p3601 = scmp.le.s32.totalorder 2, %s12
      // Predicated region
      $region37: #{cnn_forward.1} parent=5 // pred_check
        %p3602 = pneg %p3601
      $region38: #{cnn_forward.1} parent=5 // pred_check_branch
        %3604 = sbr.rel (%p3602) target = $region40
      $region39: #{cnn_forward.1} parent=5 // pred_region
        %s3605 = ssub.s32 %s12, 2
        // Predicated region
        $region41: #{cnn_forward.1} parent=39 // pred_check
          %p3606 = pneg %p109
        $region42: #{cnn_forward.1} parent=39 // pred_check_branch
          %3608 = sbr.rel (%p3606) target = $region44
        $region43: #{cnn_forward.1} parent=39 // pred_region
          %s3609 = sand.u32 %s94, 1
          %s3610 = scalar_lea.sflag [#allocation3], %s3609
          %s3611 = sand.u32 %s94, 1
          %s3612 = smul.addr %s3611, 16
          %s3613 = scalar_lea.vmem [#allocation2], %s3612
          %3614 = dma.done %s3610, 256
        $region44: #{cnn_forward.1} parent=39 // pred_fallthru
          _
      $region40: #{cnn_forward.1} parent=5 // pred_fallthru
        _
    $region6: #{cnn_forward.1} parent=1 // loop_footer
      %s16 = sadd.s32 1, %s12
    $region7: #{cnn_forward.1} parent=1 // loop_footer_branch
      %11 = sbr.rel target = $region3
    $region8: #{cnn_forward.1} parent=1 // loop_exit
      _
    %3615 = vsyncpa [#allocation3], 1
    %s3616 = scalar_lea.sflag [#allocation3], 1
    %3617 = vsyncpa %s3616, 1

</llo_original>
